<compile_context>
chip_gen: v7x
topology: tpu7x:2x2x1
jax: 0.10.0
libtpu: 0.0.40
codegen_flags: <defaults>
</compile_context>

<pallas_src>
import functools
import math

import numpy as np
import jax
import jax.numpy as jnp
from jax.experimental import pallas as pl
from jax.experimental.pallas import tpu as pltpu

NUM_TIMESTEPS = 1000   # self.num_timesteps
TIMESTEPS = 5          # self.timesteps
ETA = 0.1              # self.eta
HID = 32               # hidden width of the synthetic denoising "model"
AUG = 8                # augmented contraction dim: [skes (C) | ones | sil_t | pad]


# ----------------------------------------------------------------------------
# Host-side glue: beta schedule / compute_alpha folded into per-step affine
# DDIM coefficients, plus sinusoidal timestep embeddings.
# ----------------------------------------------------------------------------
def _ddim_schedule():
    """Returns (folded affine coeffs, raw (at, at_next) per step, timesteps).

    Folding (matches the PyTorch forward exactly; note the original uses the
    *initial* sil_T, not the carried sil_t, inside `et`):
        et       = (sil_T - sqrt(at)*sil_0) / sqrt(1-at)
        sil_next = sqrt(at_next)*sil_0 + c1*noise + c2*et
                 = A*sil_0 + B*sil_T + c1*noise
        A = sqrt(at_next) - c2*sqrt(at)/sqrt(1-at)
        B = c2/sqrt(1-at)
    """
    betas = np.linspace(1e-4, 0.02, NUM_TIMESTEPS, dtype=np.float64).astype(np.float32)
    # compute_alpha prepends a zero beta, so a_full[t + 1] == alpha(t); a_full[0] == 1
    a_full = np.cumprod(np.concatenate([[1.0], 1.0 - betas]).astype(np.float32),
                        dtype=np.float32)
    skip = NUM_TIMESTEPS // TIMESTEPS
    seq = list(range(0, NUM_TIMESTEPS, skip))
    seq_next = [-1] + seq[:-1]
    coeffs, raw, ts = [], [], []
    for i, j in zip(reversed(seq), reversed(seq_next)):
        at = float(a_full[i + 1])
        at_next = float(a_full[j + 1])
        c1 = ETA * math.sqrt((1.0 - at / at_next) * (1.0 - at_next) / (1.0 - at))
        c2 = math.sqrt(max(1.0 - at_next - c1 * c1, 0.0))
        A = math.sqrt(at_next) - c2 * math.sqrt(at) / math.sqrt(1.0 - at)
        B = c2 / math.sqrt(1.0 - at)
        coeffs.append([A, B, c1])
        raw.append((at, at_next))
        ts.append(float(i))
    return (np.asarray(coeffs, dtype=np.float32), raw,
            np.asarray(ts, dtype=np.float64))


def _timestep_embedding(ts, dim):
    half = dim // 2
    freqs = np.exp(-np.log(10000.0) * np.arange(half, dtype=np.float64) / half)
    args = ts[:, None] * freqs[None, :]
    return np.concatenate([np.sin(args), np.cos(args)], axis=-1).astype(np.float32)


# ----------------------------------------------------------------------------
# Pallas kernel.  grid = (P // tile_p,): one tile of pixels per grid step, all
# 5 diffusion steps unrolled inside.  Compute runs as a pl.loop over
# `chunk`-wide pixel sub-chunks; the per-step pre-activation is ONE small MXU
# matmul against an (AUG, chunk) VMEM scratch whose sil_t row is rewritten
# every step.
# ----------------------------------------------------------------------------
def _denoise_kernel(skes_ref, silT_ref, noise_ref, waug_ref, w2_ref, b2_ref,
                    pred_ref, x_ref, *, coeffs, chunk):
    C = skes_ref.shape[0]
    n_steps, tile_p = pred_ref.shape
    n_chunks = tile_p // chunk

    w2 = w2_ref[...]                     # (1, HID)  f32
    b2 = b2_ref[...]                     # (1, 1)    f32

    # Step/chunk-invariant rows of the augmented RHS: the "ones" row (bias +
    # temb path) and the zero padding rows (so 0-columns of W_aug never meet
    # uninitialized VMEM).
    x_ref[pl.ds(C, 1), :] = jnp.ones((1, chunk), jnp.float32)
    n_pad = AUG - (C + 2)
    if n_pad > 0:
        x_ref[pl.ds(C + 2, n_pad), :] = jnp.zeros((n_pad, chunk), jnp.float32)

    @pl.loop(0, n_chunks)
    def _(ci):
        c0 = pl.multiple_of(ci * chunk, chunk)
        sl = pl.ds(c0, chunk)

        sil_T = silT_ref[:, sl].astype(jnp.float32)                   # (1, chunk)
        x_ref[pl.ds(0, C), :] = skes_ref[:, sl].astype(jnp.float32)   # skes rows
        x_ref[pl.ds(C + 1, 1), :] = sil_T                             # sil_t(0) = sil_T

        preds = []
        for t in range(n_steps):                 # fully unrolled (5 DDIM steps)
            # model(skes, sil_t, t):
            #   sil_0 = W2 @ relu(W1s@skes + W1x*sil_t + b1 + temb(t)) + b2
            # One MXU matmul builds the whole pre-activation.
            h = jnp.maximum(
                jnp.dot(waug_ref[t], x_ref[...],
                        preferred_element_type=jnp.float32), 0.0)     # (HID, chunk)
            sil_0 = jnp.dot(w2, h, preferred_element_type=jnp.float32) + b2
            preds.append(sil_0)                                       # (1, chunk)

            if t + 1 < n_steps:                  # final DDIM update is dead code
                a = float(coeffs[t, 0])
                b = float(coeffs[t, 1])
                c1 = float(coeffs[t, 2])
                noise_t = noise_ref[t:t + 1, sl].astype(jnp.float32)  # (1, chunk)
                # NOTE: B multiplies the ORIGINAL sil_T, exactly as the PyTorch
                # forward does (et is computed from sil_T, not the carried sil_t).
                x_ref[pl.ds(C + 1, 1), :] = a * sil_0 + b * sil_T + c1 * noise_t

        # Coalesced output store: one dense (TIMESTEPS, chunk) write per chunk
        # instead of 5 single-sublane masked stores.
        pred_ref[:, sl] = jnp.concatenate(preds, axis=0)


def _pick_tile_p(P, chunk, target):
    """Largest chunk-multiple tile that divides P, keeping >= 2 grid steps."""
    n = P // chunk
    per_tile = min(max(target // chunk, 1), n)
    while n % per_tile:
        per_tile -= 1
    if n // per_tile < 2 and n >= 2:     # keep the grid splittable across 2 TCs (v7x)
        per_tile = max(1, n // 2)
        while n % per_tile:
            per_tile -= 1
    return per_tile * chunk


def diffgait_denoise(skes_cp, sil_T, noise, w_aug, w2, b2, coeffs,
                     *, tile_p=16384, chunk=512):
    C, P = skes_cp.shape
    chunk = min(chunk, P)
    assert chunk % 128 == 0 and P % chunk == 0, (P, chunk)
    assert C + 2 <= AUG
    tile_p = _pick_tile_p(P, chunk, tile_p)
    grid = (P // tile_p,)

    kernel = functools.partial(_denoise_kernel, coeffs=np.asarray(coeffs), chunk=chunk)

    return pl.pallas_call(
        kernel,
        out_shape=jax.ShapeDtypeStruct((TIMESTEPS, P), jnp.float32),
        grid=grid,
        in_specs=[
            pl.BlockSpec((C, tile_p), lambda p: (0, p)),               # skes   (bf16)
            pl.BlockSpec((1, tile_p), lambda p: (0, p)),               # sil_T  (bf16)
            pl.BlockSpec((TIMESTEPS - 1, tile_p), lambda p: (0, p)),   # noise  (bf16)
            pl.BlockSpec((TIMESTEPS, HID, AUG), lambda p: (0, 0, 0)),  # W_aug  (f32)
            pl.BlockSpec((1, HID), lambda p: (0, 0)),                  # W2
            pl.BlockSpec((1, 1), lambda p: (0, 0)),                    # b2
        ],
        out_specs=pl.BlockSpec((TIMESTEPS, tile_p), lambda p: (0, p)),
        scratch_shapes=[pltpu.VMEM((AUG, chunk), jnp.float32)],        # augmented RHS
        compiler_params=pltpu.CompilerParams(
            dimension_semantics=("parallel",)),
    )(skes_cp, sil_T, noise, w_aug, w2, b2)


# ----------------------------------------------------------------------------
# Pure-JAX reference mirroring the un-folded PyTorch forward (same bf16 inputs).
# ----------------------------------------------------------------------------
def _reference(skes_cp, sil_T, noise, w1s, w1x, b1, temb, w2, b2, raw):
    hp = jax.lax.Precision.HIGHEST
    skes = skes_cp.astype(jnp.float32)
    sil_T = sil_T.astype(jnp.float32)
    noise = noise.astype(jnp.float32)
    sil_t = sil_T
    preds = []
    for t in range(TIMESTEPS):
        pre = (jnp.dot(w1s, skes, precision=hp)
               + w1x[:, None] * sil_t
               + (jnp.asarray(temb[t]) + b1)[:, None])
        h = jnp.maximum(pre, 0.0)
        sil_0 = jnp.dot(w2, h, precision=hp) + b2
        preds.append(sil_0)
        if t + 1 < TIMESTEPS:
            at, at_next = raw[t]
            c1 = ETA * math.sqrt((1 - at / at_next) * (1 - at_next) / (1 - at))
            c2 = math.sqrt(max(1 - at_next - c1 * c1, 0.0))
            et = (sil_T - math.sqrt(at) * sil_0) / math.sqrt(1 - at)
            sil_t = math.sqrt(at_next) * sil_0 + c1 * noise[t:t + 1] + c2 * et
    return jnp.concatenate(preds, axis=0)


if __name__ == "__main__":
    n, c, s, h, w = 2, 4, 8, 16, 16
    NS = n * s
    P = NS * h * w

    key = jax.random.PRNGKey(0)
    k_skes, k_silT, k_noise, k_w1, k_w2 = jax.random.split(key, 5)

    # skes: (n, c, s, h, w)  ->  rearrange 'n c s h w -> (n s) c h w' -> (C, P)
    skes = jax.random.normal(k_skes, (n, c, s, h, w), dtype=jnp.float32)
    skes_nchw = jnp.transpose(skes, (0, 2, 1, 3, 4)).reshape(NS, c, h, w)
    skes_cp = jnp.transpose(skes_nchw, (1, 0, 2, 3)).reshape(c, P)

    # sil_T = randn(n*s, 1, h, w); per-step randn_like (last step's noise is
    # never consumed by the DDIM update, so only TIMESTEPS-1 rows are passed).
    sil_T = jax.random.normal(k_silT, (NS, 1, h, w), dtype=jnp.float32).reshape(1, P)
    step_noise = jax.random.normal(
        k_noise, (TIMESTEPS - 1, NS, 1, h, w),
        dtype=jnp.float32).reshape(TIMESTEPS - 1, P)

    coeffs_np, raw_sched, ts_np = _ddim_schedule()
    temb = _timestep_embedding(ts_np, HID)                          # (T, HID)

    # deterministic synthetic model parameters
    # TODO(synk): the PyTorch forward takes an arbitrary `model` module; a fixed
    # per-pixel MLP with sinusoidal timestep conditioning is used in its place.
    w1 = jax.random.normal(k_w1, (HID, c + 1), dtype=jnp.float32) / np.sqrt(c + 1)
    w1s, w1x = w1[:, :c], w1[:, c]                                  # (HID,C), (HID,)
    w2 = jax.random.normal(k_w2, (1, HID), dtype=jnp.float32) / np.sqrt(HID)
    b1 = jnp.zeros((HID,), jnp.float32)
    b2 = jnp.zeros((1, 1), jnp.float32)

    # host-side packing of the augmented LHS: W_aug[t] = [ w1s | b1+temb(t) | w1x | 0 ]
    w_aug = jnp.zeros((TIMESTEPS, HID, AUG), jnp.float32)
    w_aug = w_aug.at[:, :, :c].set(jnp.broadcast_to(w1s, (TIMESTEPS, HID, c)))
    w_aug = w_aug.at[:, :, c].set(jnp.asarray(temb) + b1[None, :])
    w_aug = w_aug.at[:, :, c + 1].set(jnp.broadcast_to(w1x, (TIMESTEPS, HID)))

    # bf16 over HBM for the per-pixel tensors; f32 compute in-kernel
    skes_bf = skes_cp.astype(jnp.bfloat16)
    silT_bf = sil_T.astype(jnp.bfloat16)
    noise_bf = step_noise.astype(jnp.bfloat16)

    preds_flat = diffgait_denoise(skes_bf, silT_bf, noise_bf, w_aug, w2, b2,
                                  coeffs_np, tile_p=16384, chunk=512)
    preds_flat = jax.block_until_ready(preds_flat)

    # verify against the un-folded PyTorch-semantics reference (same bf16 inputs)
    ref = _reference(skes_bf, silT_bf, noise_bf, w1s, w1x, b1, temb, w2, b2,
                     raw_sched)
    err = float(jnp.max(jnp.abs(preds_flat - ref)))
    assert err < 3e-2, f"kernel vs reference mismatch: max abs err = {err}"
    assert bool(jnp.all(jnp.isfinite(preds_flat)))

    # back to the PyTorch return convention: list of 5 tensors of shape (n*s, 1, h, w)
    preds = [preds_flat[k].reshape(NS, h, w)[:, None, :, :] for k in range(TIMESTEPS)]
    assert all(p.shape == (NS, 1, h, w) for p in preds)
    print("KERNEL_OK")
</pallas_src>

<mosaic_0001>
module attributes {stable_mosaic.version = 11 : i64} {
  func.func @_denoise_kernel(%arg0: i32, %arg1: memref<4x2048xbf16, #tpu.memory_space<vmem>>, %arg2: memref<1x2048xbf16, #tpu.memory_space<vmem>>, %arg3: memref<4x2048xbf16, #tpu.memory_space<vmem>>, %arg4: memref<5x32x8xf32, #tpu.memory_space<vmem>>, %arg5: memref<1x32xf32, #tpu.memory_space<vmem>>, %arg6: memref<1x1xf32, #tpu.memory_space<vmem>>, %arg7: memref<5x2048xf32, #tpu.memory_space<vmem>>, %arg8: memref<8x512xf32, #tpu.memory_space<vmem>>) attributes {dimension_semantics = [#tpu.dimension_semantics<parallel>], iteration_bounds = array<i64: 2>, scalar_prefetch = 0 : i64, scratch_operands = 1 : i64, tpu.core_type = #tpu.core_type<tc>, window_params = [{transform_indices = @transform_0, window_bounds = array<i64: 4, 2048>}, {transform_indices = @transform_1, window_bounds = array<i64: 1, 2048>}, {transform_indices = @transform_2, window_bounds = array<i64: 4, 2048>}, {pipeline_mode = #tpu.pipeline_mode<synchronous>, transform_indices = @transform_3, window_bounds = array<i64: 5, 32, 8>}, {pipeline_mode = #tpu.pipeline_mode<synchronous>, transform_indices = @transform_4, window_bounds = array<i64: 1, 32>}, {pipeline_mode = #tpu.pipeline_mode<synchronous>, transform_indices = @transform_5, window_bounds = array<i64: 1, 1>}, {transform_indices = @transform_6, window_bounds = array<i64: 5, 2048>}]} {
    %c0 = arith.constant 0 : index
    %c0_0 = arith.constant 0 : index
    %0 = vector.load %arg5[%c0, %c0_0] : memref<1x32xf32, #tpu.memory_space<vmem>>, vector<1x32xf32>
    %c0_1 = arith.constant 0 : index
    %c0_2 = arith.constant 0 : index
    %1 = vector.load %arg6[%c0_1, %c0_2] : memref<1x1xf32, #tpu.memory_space<vmem>>, vector<1x1xf32>
    %cst = arith.constant 1.000000e+00 : f32
    %2 = vector.broadcast %cst : f32 to vector<1x512xf32>
    %c4 = arith.constant 4 : index
    %c0_3 = arith.constant 0 : index
    %3 = vector.load %arg8[%c4, %c0_3] : memref<8x512xf32, #tpu.memory_space<vmem>>, vector<1x512xf32>
    tpu.vector_store %arg8[%c4, %c0_3], %2 {strides = array<i32>} : memref<8x512xf32, #tpu.memory_space<vmem>>, vector<1x512xf32>,
    %cst_4 = arith.constant 0.000000e+00 : f32
    %4 = vector.broadcast %cst_4 : f32 to vector<2x512xf32>
    %c6 = arith.constant 6 : index
    %c0_5 = arith.constant 0 : index
    %5 = vector.load %arg8[%c6, %c0_5] : memref<8x512xf32, #tpu.memory_space<vmem>>, vector<2x512xf32>
    tpu.vector_store %arg8[%c6, %c0_5], %4 {strides = array<i32>} : memref<8x512xf32, #tpu.memory_space<vmem>>, vector<2x512xf32>,
    %c0_i32 = arith.constant 0 : i32
    %c4_i32 = arith.constant 4 : i32
    %6 = arith.addi %c0_i32, %c4_i32 : i32
    %c1_i32 = arith.constant 1 : i32
    scf.for %arg9 = %c0_i32 to %6 step %c1_i32  : i32 {
      %c1_i32_7 = arith.constant 1 : i32
      %7 = arith.muli %arg9, %c1_i32_7 : i32
      %c0_i32_8 = arith.constant 0 : i32
      %8 = arith.addi %c0_i32_8, %7 : i32
      %c512_i32 = arith.constant 512 : i32
      %9 = arith.muli %8, %c512_i32 : i32
      %10 = tpu.assume_multiple %9, 512 : i32
      %c0_9 = arith.constant 0 : index
      %11 = arith.index_cast %10 : i32 to index
      %12 = vector.load %arg2[%c0_9, %11] : memref<1x2048xbf16, #tpu.memory_space<vmem>>, vector<1x512xbf16>
      %13 = arith.extf %12 : vector<1x512xbf16> to vector<1x512xf32>
      %c0_10 = arith.constant 0 : index
      %14 = arith.index_cast %10 : i32 to index
      %15 = vector.load %arg1[%c0_10, %14] : memref<4x2048xbf16, #tpu.memory_space<vmem>>, vector<4x512xbf16>
      %16 = arith.extf %15 : vector<4x512xbf16> to vector<4x512xf32>
      %c0_11 = arith.constant 0 : index
      %c0_12 = arith.constant 0 : index
      %17 = vector.load %arg8[%c0_11, %c0_12] : memref<8x512xf32, #tpu.memory_space<vmem>>, vector<4x512xf32>
      tpu.vector_store %arg8[%c0_11, %c0_12], %16 {strides = array<i32>} : memref<8x512xf32, #tpu.memory_space<vmem>>, vector<4x512xf32>,
      %c5 = arith.constant 5 : index
      %c0_13 = arith.constant 0 : index
      %18 = vector.load %arg8[%c5, %c0_13] : memref<8x512xf32, #tpu.memory_space<vmem>>, vector<1x512xf32>
      tpu.vector_store %arg8[%c5, %c0_13], %13 {strides = array<i32>} : memref<8x512xf32, #tpu.memory_space<vmem>>, vector<1x512xf32>,
      %c0_14 = arith.constant 0 : index
      %c0_15 = arith.constant 0 : index
      %c0_16 = arith.constant 0 : index
      %19 = vector.load %arg4[%c0_14, %c0_15, %c0_16] : memref<5x32x8xf32, #tpu.memory_space<vmem>>, vector<1x32x8xf32>
      %20 = vector.shape_cast %19 : vector<1x32x8xf32> to vector<32x8xf32>
      %c0_17 = arith.constant 0 : index
      %c0_18 = arith.constant 0 : index
      %21 = vector.load %arg8[%c0_17, %c0_18] : memref<8x512xf32, #tpu.memory_space<vmem>>, vector<8x512xf32>
      %cst_19 = arith.constant dense<0.000000e+00> : vector<32x512xf32>
      %22 = tpu.matmul %20, %21, %cst_19 {dimension_numbers = #tpu.dot_dimension_numbers<[1], [0], [0], [1], [0, 0, 1, 1], [], []>} : vector<32x8xf32>, vector<8x512xf32>, vector<32x512xf32> -> vector<32x512xf32>
      %cst_20 = arith.constant 0.000000e+00 : f32
      %23 = vector.broadcast %cst_20 : f32 to vector<32x512xf32>
      %24 = arith.maximumf %22, %23 : vector<32x512xf32>
      %cst_21 = arith.constant dense<0.000000e+00> : vector<1x512xf32>
      %25 = tpu.matmul %0, %24, %cst_21 {dimension_numbers = #tpu.dot_dimension_numbers<[1], [0], [0], [1], [0, 0, 1, 1], [], []>} : vector<1x32xf32>, vector<32x512xf32>, vector<1x512xf32> -> vector<1x512xf32>
      %26 = vector.broadcast %1 : vector<1x1xf32> to vector<1x512xf32>
      %27 = arith.addf %25, %26 : vector<1x512xf32>
      %c0_22 = arith.constant 0 : index
      %28 = arith.index_cast %10 : i32 to index
      %29 = vector.load %arg3[%c0_22, %28] : memref<4x2048xbf16, #tpu.memory_space<vmem>>, vector<1x512xbf16>
      %30 = arith.extf %29 : vector<1x512xbf16> to vector<1x512xf32>
      %cst_23 = arith.constant 0.121723369 : f32
      %31 = vector.broadcast %cst_23 : f32 to vector<1x512xf32>
      %32 = arith.mulf %31, %27 : vector<1x512xf32>
      %cst_24 = arith.constant 0.983212172 : f32
      %33 = vector.broadcast %cst_24 : f32 to vector<1x512xf32>
      %34 = arith.mulf %33, %13 : vector<1x512xf32>
      %35 = arith.addf %32, %34 : vector<1x512xf32>
      %cst_25 = arith.constant 0.0958312079 : f32
      %36 = vector.broadcast %cst_25 : f32 to vector<1x512xf32>
      %37 = arith.mulf %36, %30 : vector<1x512xf32>
      %38 = arith.addf %35, %37 : vector<1x512xf32>
      %c5_26 = arith.constant 5 : index
      %c0_27 = arith.constant 0 : index
      %39 = vector.load %arg8[%c5_26, %c0_27] : memref<8x512xf32, #tpu.memory_space<vmem>>, vector<1x512xf32>
      tpu.vector_store %arg8[%c5_26, %c0_27], %38 {strides = array<i32>} : memref<8x512xf32, #tpu.memory_space<vmem>>, vector<1x512xf32>,
      %c1 = arith.constant 1 : index
      %c0_28 = arith.constant 0 : index
      %c0_29 = arith.constant 0 : index
      %40 = vector.load %arg4[%c1, %c0_28, %c0_29] : memref<5x32x8xf32, #tpu.memory_space<vmem>>, vector<1x32x8xf32>
      %41 = vector.shape_cast %40 : vector<1x32x8xf32> to vector<32x8xf32>
      %c0_30 = arith.constant 0 : index
      %c0_31 = arith.constant 0 : index
      %42 = vector.load %arg8[%c0_30, %c0_31] : memref<8x512xf32, #tpu.memory_space<vmem>>, vector<8x512xf32>
      %cst_32 = arith.constant dense<0.000000e+00> : vector<32x512xf32>
      %43 = tpu.matmul %41, %42, %cst_32 {dimension_numbers = #tpu.dot_dimension_numbers<[1], [0], [0], [1], [0, 0, 1, 1], [], []>} : vector<32x8xf32>, vector<8x512xf32>, vector<32x512xf32> -> vector<32x512xf32>
      %cst_33 = arith.constant 0.000000e+00 : f32
      %44 = vector.broadcast %cst_33 : f32 to vector<32x512xf32>
      %45 = arith.maximumf %43, %44 : vector<32x512xf32>
      %cst_34 = arith.constant dense<0.000000e+00> : vector<1x512xf32>
      %46 = tpu.matmul %0, %45, %cst_34 {dimension_numbers = #tpu.dot_dimension_numbers<[1], [0], [0], [1], [0, 0, 1, 1], [], []>} : vector<1x32xf32>, vector<32x512xf32>, vector<1x512xf32> -> vector<1x512xf32>
      %47 = vector.broadcast %1 : vector<1x1xf32> to vector<1x512xf32>
      %48 = arith.addf %46, %47 : vector<1x512xf32>
      %c1_35 = arith.constant 1 : index
      %49 = arith.index_cast %10 : i32 to index
      %50 = vector.load %arg3[%c1_35, %49] : memref<4x2048xbf16, #tpu.memory_space<vmem>>, vector<1x512xbf16>
      %51 = arith.extf %50 : vector<1x512xbf16> to vector<1x512xf32>
      %cst_36 = arith.constant 0.295154899 : f32
      %52 = vector.broadcast %cst_36 : f32 to vector<1x512xf32>
      %53 = arith.mulf %52, %48 : vector<1x512xf32>
      %cst_37 = arith.constant 0.905657827 : f32
      %54 = vector.broadcast %cst_37 : f32 to vector<1x512xf32>
      %55 = arith.mulf %54, %13 : vector<1x512xf32>
      %56 = arith.addf %53, %55 : vector<1x512xf32>
      %cst_38 = arith.constant 0.0847512558 : f32
      %57 = vector.broadcast %cst_38 : f32 to vector<1x512xf32>
      %58 = arith.mulf %57, %51 : vector<1x512xf32>
      %59 = arith.addf %56, %58 : vector<1x512xf32>
      %c5_39 = arith.constant 5 : index
      %c0_40 = arith.constant 0 : index
      %60 = vector.load %arg8[%c5_39, %c0_40] : memref<8x512xf32, #tpu.memory_space<vmem>>, vector<1x512xf32>
      tpu.vector_store %arg8[%c5_39, %c0_40], %59 {strides = array<i32>} : memref<8x512xf32, #tpu.memory_space<vmem>>, vector<1x512xf32>,
      %c2 = arith.constant 2 : index
      %c0_41 = arith.constant 0 : index
      %c0_42 = arith.constant 0 : index
      %61 = vector.load %arg4[%c2, %c0_41, %c0_42] : memref<5x32x8xf32, #tpu.memory_space<vmem>>, vector<1x32x8xf32>
      %62 = vector.shape_cast %61 : vector<1x32x8xf32> to vector<32x8xf32>
      %c0_43 = arith.constant 0 : index
      %c0_44 = arith.constant 0 : index
      %63 = vector.load %arg8[%c0_43, %c0_44] : memref<8x512xf32, #tpu.memory_space<vmem>>, vector<8x512xf32>
      %cst_45 = arith.constant dense<0.000000e+00> : vector<32x512xf32>
      %64 = tpu.matmul %62, %63, %cst_45 {dimension_numbers = #tpu.dot_dimension_numbers<[1], [0], [0], [1], [0, 0, 1, 1], [], []>} : vector<32x8xf32>, vector<8x512xf32>, vector<32x512xf32> -> vector<32x512xf32>
      %cst_46 = arith.constant 0.000000e+00 : f32
      %65 = vector.broadcast %cst_46 : f32 to vector<32x512xf32>
      %66 = arith.maximumf %64, %65 : vector<32x512xf32>
      %cst_47 = arith.constant dense<0.000000e+00> : vector<1x512xf32>
      %67 = tpu.matmul %0, %66, %cst_47 {dimension_numbers = #tpu.dot_dimension_numbers<[1], [0], [0], [1], [0, 0, 1, 1], [], []>} : vector<1x32xf32>, vector<32x512xf32>, vector<1x512xf32> -> vector<1x512xf32>
      %68 = vector.broadcast %1 : vector<1x1xf32> to vector<1x512xf32>
      %69 = arith.addf %67, %68 : vector<1x512xf32>
      %c2_48 = arith.constant 2 : index
      %70 = arith.index_cast %10 : i32 to index
      %71 = vector.load %arg3[%c2_48, %70] : memref<4x2048xbf16, #tpu.memory_space<vmem>>, vector<1x512xbf16>
      %72 = arith.extf %71 : vector<1x512xbf16> to vector<1x512xf32>
      %cst_49 = arith.constant 0.524201453 : f32
      %73 = vector.broadcast %cst_49 : f32 to vector<1x512xf32>
      %74 = arith.mulf %73, %69 : vector<1x512xf32>
      %cst_50 = arith.constant 0.649935662 : f32
      %75 = vector.broadcast %cst_50 : f32 to vector<1x512xf32>
      %76 = arith.mulf %75, %13 : vector<1x512xf32>
      %77 = arith.addf %74, %76 : vector<1x512xf32>
      %cst_51 = arith.constant 0.0548145026 : f32
      %78 = vector.broadcast %cst_51 : f32 to vector<1x512xf32>
      %79 = arith.mulf %78, %72 : vector<1x512xf32>
      %80 = arith.addf %77, %79 : vector<1x512xf32>
      %c5_52 = arith.constant 5 : index
      %c0_53 = arith.constant 0 : index
      %81 = vector.load %arg8[%c5_52, %c0_53] : memref<8x512xf32, #tpu.memory_space<vmem>>, vector<1x512xf32>
      tpu.vector_store %arg8[%c5_52, %c0_53], %80 {strides = array<i32>} : memref<8x512xf32, #tpu.memory_space<vmem>>, vector<1x512xf32>,
      %c3 = arith.constant 3 : index
      %c0_54 = arith.constant 0 : index
      %c0_55 = arith.constant 0 : index
      %82 = vector.load %arg4[%c3, %c0_54, %c0_55] : memref<5x32x8xf32, #tpu.memory_space<vmem>>, vector<1x32x8xf32>
      %83 = vector.shape_cast %82 : vector<1x32x8xf32> to vector<32x8xf32>
      %c0_56 = arith.constant 0 : index
      %c0_57 = arith.constant 0 : index
      %84 = vector.load %arg8[%c0_56, %c0_57] : memref<8x512xf32, #tpu.memory_space<vmem>>, vector<8x512xf32>
      %cst_58 = arith.constant dense<0.000000e+00> : vector<32x512xf32>
      %85 = tpu.matmul %83, %84, %cst_58 {dimension_numbers = #tpu.dot_dimension_numbers<[1], [0], [0], [1], [0, 0, 1, 1], [], []>} : vector<32x8xf32>, vector<8x512xf32>, vector<32x512xf32> -> vector<32x512xf32>
      %cst_59 = arith.constant 0.000000e+00 : f32
      %86 = vector.broadcast %cst_59 : f32 to vector<32x512xf32>
      %87 = arith.maximumf %85, %86 : vector<32x512xf32>
      %cst_60 = arith.constant dense<0.000000e+00> : vector<1x512xf32>
      %88 = tpu.matmul %0, %87, %cst_60 {dimension_numbers = #tpu.dot_dimension_numbers<[1], [0], [0], [1], [0, 0, 1, 1], [], []>} : vector<1x32xf32>, vector<32x512xf32>, vector<1x512xf32> -> vector<1x512xf32>
      %89 = vector.broadcast %1 : vector<1x1xf32> to vector<1x512xf32>
      %90 = arith.addf %88, %89 : vector<1x512xf32>
      %c3_61 = arith.constant 3 : index
      %91 = arith.index_cast %10 : i32 to index
      %92 = vector.load %arg3[%c3_61, %91] : memref<4x2048xbf16, #tpu.memory_space<vmem>>, vector<1x512xbf16>
      %93 = arith.extf %92 : vector<1x512xbf16> to vector<1x512xf32>
      %cst_62 = arith.constant 0.986198127 : f32
      %94 = vector.broadcast %cst_62 : f32 to vector<1x512xf32>
      %95 = arith.mulf %94, %90 : vector<1x512xf32>
      %cst_63 = arith.constant 0.0169743821 : f32
      %96 = vector.broadcast %cst_63 : f32 to vector<1x512xf32>
      %97 = arith.mulf %96, %13 : vector<1x512xf32>
      %98 = arith.addf %95, %97 : vector<1x512xf32>
      %cst_64 = arith.constant 9.99987474E-4 : f32
      %99 = vector.broadcast %cst_64 : f32 to vector<1x512xf32>
      %100 = arith.mulf %99, %93 : vector<1x512xf32>
      %101 = arith.addf %98, %100 : vector<1x512xf32>
      %c5_65 = arith.constant 5 : index
      %c0_66 = arith.constant 0 : index
      %102 = vector.load %arg8[%c5_65, %c0_66] : memref<8x512xf32, #tpu.memory_space<vmem>>, vector<1x512xf32>
      tpu.vector_store %arg8[%c5_65, %c0_66], %101 {strides = array<i32>} : memref<8x512xf32, #tpu.memory_space<vmem>>, vector<1x512xf32>,
      %c4_67 = arith.constant 4 : index
      %c0_68 = arith.constant 0 : index
      %c0_69 = arith.constant 0 : index
      %103 = vector.load %arg4[%c4_67, %c0_68, %c0_69] : memref<5x32x8xf32, #tpu.memory_space<vmem>>, vector<1x32x8xf32>
      %104 = vector.shape_cast %103 : vector<1x32x8xf32> to vector<32x8xf32>
      %c0_70 = arith.constant 0 : index
      %c0_71 = arith.constant 0 : index
      %105 = vector.load %arg8[%c0_70, %c0_71] : memref<8x512xf32, #tpu.memory_space<vmem>>, vector<8x512xf32>
      %cst_72 = arith.constant dense<0.000000e+00> : vector<32x512xf32>
      %106 = tpu.matmul %104, %105, %cst_72 {dimension_numbers = #tpu.dot_dimension_numbers<[1], [0], [0], [1], [0, 0, 1, 1], [], []>} : vector<32x8xf32>, vector<8x512xf32>, vector<32x512xf32> -> vector<32x512xf32>
      %cst_73 = arith.constant 0.000000e+00 : f32
      %107 = vector.broadcast %cst_73 : f32 to vector<32x512xf32>
      %108 = arith.maximumf %106, %107 : vector<32x512xf32>
      %cst_74 = arith.constant dense<0.000000e+00> : vector<1x512xf32>
      %109 = tpu.matmul %0, %108, %cst_74 {dimension_numbers = #tpu.dot_dimension_numbers<[1], [0], [0], [1], [0, 0, 1, 1], [], []>} : vector<1x32xf32>, vector<32x512xf32>, vector<1x512xf32> -> vector<1x512xf32>
      %110 = vector.broadcast %1 : vector<1x1xf32> to vector<1x512xf32>
      %111 = arith.addf %109, %110 : vector<1x512xf32>
      %112 = tpu.concatenate %27, %48, %69, %90, %111 in 0 : vector<1x512xf32>, vector<1x512xf32>, vector<1x512xf32>, vector<1x512xf32>, vector<1x512xf32> -> vector<5x512xf32>
      %c0_75 = arith.constant 0 : index
      %113 = arith.index_cast %10 : i32 to index
      %114 = vector.load %arg7[%c0_75, %113] : memref<5x2048xf32, #tpu.memory_space<vmem>>, vector<5x512xf32>
      tpu.vector_store %arg7[%c0_75, %113], %112 {strides = array<i32>} : memref<5x2048xf32, #tpu.memory_space<vmem>>, vector<5x512xf32>,
    }
    %c4_i32_6 = arith.constant 4 : i32
    return
  }
  func.func @transform_0(%arg0: i32) -> (i32, i32) {
    %c0_i32 = arith.constant 0 : i32
    %c0_i32_0 = arith.constant 0 : i32
    return %c0_i32, %arg0 : i32, i32
  }
  func.func @transform_1(%arg0: i32) -> (i32, i32) {
    %c0_i32 = arith.constant 0 : i32
    %c0_i32_0 = arith.constant 0 : i32
    return %c0_i32, %arg0 : i32, i32
  }
  func.func @transform_2(%arg0: i32) -> (i32, i32) {
    %c0_i32 = arith.constant 0 : i32
    %c0_i32_0 = arith.constant 0 : i32
    return %c0_i32, %arg0 : i32, i32
  }
  func.func @transform_3(%arg0: i32) -> (i32, i32, i32) {
    %c0_i32 = arith.constant 0 : i32
    %c0_i32_0 = arith.constant 0 : i32
    %c0_i32_1 = arith.constant 0 : i32
    %c0_i32_2 = arith.constant 0 : i32
    return %c0_i32, %c0_i32_0, %c0_i32_1 : i32, i32, i32
  }
  func.func @transform_4(%arg0: i32) -> (i32, i32) {
    %c0_i32 = arith.constant 0 : i32
    %c0_i32_0 = arith.constant 0 : i32
    %c0_i32_1 = arith.constant 0 : i32
    return %c0_i32, %c0_i32_0 : i32, i32
  }
  func.func @transform_5(%arg0: i32) -> (i32, i32) {
    %c0_i32 = arith.constant 0 : i32
    %c0_i32_0 = arith.constant 0 : i32
    %c0_i32_1 = arith.constant 0 : i32
    return %c0_i32, %c0_i32_0 : i32, i32
  }
  func.func @transform_6(%arg0: i32) -> (i32, i32) {
    %c0_i32 = arith.constant 0 : i32
    %c0_i32_0 = arith.constant 0 : i32
    return %c0_i32, %arg0 : i32, i32
  }
}

</mosaic_0001>

<llo_original>
// kernel: tpu_custom_call.1
$region0: #{tpu_custom_call.1}
  #allocation0 [shape = 'u32[]', space=smem, size = 0x4, offset = 0x4, fixed_abs, tag = 'smem constant byte address 0x4 - core index']
  #allocation1 [shape = 'u32[144,128]{1,0:T(1,128)}', space=vmem, size = 0x12000, scoped, tag = 'internal scratch']
  #allocation2 [shape = 'f32[8,512]{1,0:T(8,128)}', space=vmem, size = 0x4000, scoped, tag = 'scratch operand']
  #allocation3 [shape = 'f32[1,1]{1,0:T(1,128)S(1)}', space=vmem, size = 0x200, scoped, tag = 'scoped memory for tpu_custom_call.1']
  %s0 = inlined_call_operand.vmem [shape: bf16[4,4096], index: 0, kind: input, shape index: {}]
  %s1 = inlined_call_operand.vmem [shape: bf16[1,4096], index: 1, kind: input, shape index: {}]
  %s2 = inlined_call_operand.vmem [shape: bf16[4,4096], index: 2, kind: input, shape index: {}]
  %s3 = inlined_call_operand.vmem [shape: f32[5,32,8], index: 3, kind: input, shape index: {}]
  %s4 = inlined_call_operand.vmem [shape: f32[1,32], index: 4, kind: input, shape index: {}]
  %s5 = inlined_call_operand.<no memory space> [shape: f32[1,1], index: 5, kind: input, shape index: {}]
  %s6 = inlined_call_operand.hbm [shape: f32[5,4096], index: 6, kind: output, shape index: {}]
  %s7 = sld [smem:[#allocation0]]
  $region64: #{tpu_custom_call.1} parent=0
    _
  %s9 = ssub.s32 1, %s7
  %s10 = scalar_select 0, %s9, %s7
  %v11 = vstv %s5
  %12 = vst [vmem:[#allocation3] sm:$0x1] %v11
  $region1: #{tpu_custom_call.1} parent=0
    #allocation4 [shape = 'u8[131072]{0}', space=vmem, size = 0x20000, scoped, tag = 'output window, operand 0']
    #allocation5 [shape = 's32[2]{0}', space=sflag, size = 0x8, scoped, tag = 'scoped memory for tpu_custom_call.1']
    %13 = vsyncpa [#allocation5], 0
    %s14 = scalar_lea.sflag [#allocation5], 1
    %15 = vsyncpa %s14, 0
    loop: start=0, step=1, limit=4
    $region2: #{tpu_custom_call.1} parent=1 // loop_pre_header
      _
    $region3: #{tpu_custom_call.1} parent=1 // loop_header
      %s17 = sphi 0, %s21
      %p18 = scmp.ge.s32.totalorder %s17, 4
      %s27 = sphi 0, %s29
      %s30 = sphi 0, %s27
      %s31 = sphi 0, %s30
      %s47 = sphi 0, %s31
      %s53 = sphi 0, %s55
      %s56 = sphi 0, %s53
      %s57 = sphi 0, %s56
      %s73 = sphi 0, %s57
      %s79 = sphi 0, %s81
      %s82 = sphi 0, %s79
      %s83 = sphi 0, %s82
      %s99 = sphi 0, %s83
      %s103 = sphi 0, %s103
      %s105 = sphi 0, %s103
      %s106 = sphi 0, %s105
      %s120 = sphi 0, %s106
      %s124 = sphi 0, %s124
      %s126 = sphi 0, %s124
      %s127 = sphi 0, %s126
      %s141 = sphi 0, %s127
      %s145 = sphi 0, %s145
      %s147 = sphi 0, %s145
      %s148 = sphi 0, %s147
      %s162 = sphi 0, %s148
      %s168 = sphi 0, %s170
      %s171 = sphi 0, %s168
      %s172 = sphi 0, %s171
      %s188 = sphi 0, %s172
    $region4: #{tpu_custom_call.1} parent=1 // loop_header_branch
      %20 = sbr.rel (%p18) target = $region8
    $region5: #{tpu_custom_call.1} parent=1 // loop_body
      %s22 = ssub.s32 %s17, 1
      %s23 = ssub.s32 %s17, 2
      %s24 = sadd.s32 %s17, 1
      %s25 = ssub.s32 %s17, %s24
      %p26 = scmp.eq.s32.totalorder %s25, 0
      %s28 = sadd.s32 %s27, 1
      %s29 = scalar_select %p26, %s27, %s28
      %p32 = pneg %p26
      %p33 = scmp.eq.s32.totalorder %s17, 1
      %p34 = por %p32, %p33
      %p35 = scmp.ne.s32.totalorder %s27, %s30
      %p36 = scmp.eq.s32.totalorder %s17, 0
      %p37 = por %p35, %p36
      %p38 = scmp.ne.s32.totalorder %s27, %s30
      %p39 = scmp.eq.s32.totalorder %s22, 1
      %p40 = por %p38, %p39
      %p41 = scmp.ne.s32.totalorder %s30, %s31
      %p42 = scmp.eq.s32.totalorder %s22, 0
      %p43 = por %p41, %p42
      %p44 = scmp.ne.s32.totalorder %s30, %s31
      %p45 = scmp.eq.s32.totalorder %s23, 1
      %p46 = por %p44, %p45
      %p48 = scmp.ne.s32.totalorder %s31, %s47
      %p49 = scmp.eq.s32.totalorder %s23, 0
      %p50 = por %p48, %p49
      %s51 = ssub.s32 %s17, %s24
      %p52 = scmp.eq.s32.totalorder %s51, 0
      %s54 = sadd.s32 %s53, 1
      %s55 = scalar_select %p52, %s53, %s54
      %p58 = pneg %p52
      %p59 = scmp.eq.s32.totalorder %s17, 1
      %p60 = por %p58, %p59
      %p61 = scmp.ne.s32.totalorder %s53, %s56
      %p62 = scmp.eq.s32.totalorder %s17, 0
      %p63 = por %p61, %p62
      %p64 = scmp.ne.s32.totalorder %s53, %s56
      %p65 = scmp.eq.s32.totalorder %s22, 1
      %p66 = por %p64, %p65
      %p67 = scmp.ne.s32.totalorder %s56, %s57
      %p68 = scmp.eq.s32.totalorder %s22, 0
      %p69 = por %p67, %p68
      %p70 = scmp.ne.s32.totalorder %s56, %s57
      %p71 = scmp.eq.s32.totalorder %s23, 1
      %p72 = por %p70, %p71
      %p74 = scmp.ne.s32.totalorder %s57, %s73
      %p75 = scmp.eq.s32.totalorder %s23, 0
      %p76 = por %p74, %p75
      %s77 = ssub.s32 %s17, %s24
      %p78 = scmp.eq.s32.totalorder %s77, 0
      %s80 = sadd.s32 %s79, 1
      %s81 = scalar_select %p78, %s79, %s80
      %p84 = pneg %p78
      %p85 = scmp.eq.s32.totalorder %s17, 1
      %p86 = por %p84, %p85
      %p87 = scmp.ne.s32.totalorder %s79, %s82
      %p88 = scmp.eq.s32.totalorder %s17, 0
      %p89 = por %p87, %p88
      %p90 = scmp.ne.s32.totalorder %s79, %s82
      %p91 = scmp.eq.s32.totalorder %s22, 1
      %p92 = por %p90, %p91
      %p93 = scmp.ne.s32.totalorder %s82, %s83
      %p94 = scmp.eq.s32.totalorder %s22, 0
      %p95 = por %p93, %p94
      %p96 = scmp.ne.s32.totalorder %s82, %s83
      %p97 = scmp.eq.s32.totalorder %s23, 1
      %p98 = por %p96, %p97
      %p100 = scmp.ne.s32.totalorder %s83, %s99
      %p101 = scmp.eq.s32.totalorder %s23, 0
      %p102 = por %p100, %p101
      %s104 = sadd.s32 %s103, 1
      %p107 = scmp.eq.s32.totalorder %s17, 1
      %p108 = scmp.ne.s32.totalorder %s103, %s105
      %p109 = scmp.eq.s32.totalorder %s17, 0
      %p110 = por %p108, %p109
      %p111 = scmp.ne.s32.totalorder %s103, %s105
      %p112 = scmp.eq.s32.totalorder %s22, 1
      %p113 = por %p111, %p112
      %p114 = scmp.ne.s32.totalorder %s105, %s106
      %p115 = scmp.eq.s32.totalorder %s22, 0
      %p116 = por %p114, %p115
      %p117 = scmp.ne.s32.totalorder %s105, %s106
      %p118 = scmp.eq.s32.totalorder %s23, 1
      %p119 = por %p117, %p118
      %p121 = scmp.ne.s32.totalorder %s106, %s120
      %p122 = scmp.eq.s32.totalorder %s23, 0
      %p123 = por %p121, %p122
      %s125 = sadd.s32 %s124, 1
      %p128 = scmp.eq.s32.totalorder %s17, 1
      %p129 = scmp.ne.s32.totalorder %s124, %s126
      %p130 = scmp.eq.s32.totalorder %s17, 0
      %p131 = por %p129, %p130
      %p132 = scmp.ne.s32.totalorder %s124, %s126
      %p133 = scmp.eq.s32.totalorder %s22, 1
      %p134 = por %p132, %p133
      %p135 = scmp.ne.s32.totalorder %s126, %s127
      %p136 = scmp.eq.s32.totalorder %s22, 0
      %p137 = por %p135, %p136
      %p138 = scmp.ne.s32.totalorder %s126, %s127
      %p139 = scmp.eq.s32.totalorder %s23, 1
      %p140 = por %p138, %p139
      %p142 = scmp.ne.s32.totalorder %s127, %s141
      %p143 = scmp.eq.s32.totalorder %s23, 0
      %p144 = por %p142, %p143
      %s146 = sadd.s32 %s145, 1
      %p149 = scmp.eq.s32.totalorder %s17, 1
      %p150 = scmp.ne.s32.totalorder %s145, %s147
      %p151 = scmp.eq.s32.totalorder %s17, 0
      %p152 = por %p150, %p151
      %p153 = scmp.ne.s32.totalorder %s145, %s147
      %p154 = scmp.eq.s32.totalorder %s22, 1
      %p155 = por %p153, %p154
      %p156 = scmp.ne.s32.totalorder %s147, %s148
      %p157 = scmp.eq.s32.totalorder %s22, 0
      %p158 = por %p156, %p157
      %p159 = scmp.ne.s32.totalorder %s147, %s148
      %p160 = scmp.eq.s32.totalorder %s23, 1
      %p161 = por %p159, %p160
      %p163 = scmp.ne.s32.totalorder %s148, %s162
      %p164 = scmp.eq.s32.totalorder %s23, 0
      %p165 = por %p163, %p164
      %s166 = ssub.s32 %s17, %s24
      %p167 = scmp.eq.s32.totalorder %s166, 0
      %s169 = sadd.s32 %s168, 1
      %s170 = scalar_select %p167, %s168, %s169
      %p173 = pneg %p167
      %p174 = scmp.eq.s32.totalorder %s17, 1
      %p175 = por %p173, %p174
      %p176 = scmp.ne.s32.totalorder %s168, %s171
      %p177 = scmp.eq.s32.totalorder %s17, 0
      %p178 = por %p176, %p177
      %p179 = scmp.ne.s32.totalorder %s168, %s171
      %p180 = scmp.eq.s32.totalorder %s22, 1
      %p181 = por %p179, %p180
      %p182 = scmp.ne.s32.totalorder %s171, %s172
      %p183 = scmp.eq.s32.totalorder %s22, 0
      %p184 = por %p182, %p183
      %p185 = scmp.ne.s32.totalorder %s171, %s172
      %p186 = scmp.eq.s32.totalorder %s23, 1
      %p187 = por %p185, %p186
      %p189 = scmp.ne.s32.totalorder %s172, %s188
      %p190 = scmp.eq.s32.totalorder %s23, 0
      %p191 = por %p189, %p190
      %p192 = scmp.le.s32.totalorder 1, %s17
      %p193 = scmp.lt.s32.totalorder %s17, 3
      %p194 = pnand %p192, %p193
      %p195 = pneg %p194
      // Predicated region
      $region9: #{tpu_custom_call.1} parent=5 // pred_check
        _
      $region10: #{tpu_custom_call.1} parent=5 // pred_check_branch
        %197 = sbr.rel (%p194) target = $region12
      $region11: #{tpu_custom_call.1} parent=5 // pred_region
        %s198 = ssub.s32 %s17, 1
        // Predicated region
        $region13: #{tpu_custom_call.1} parent=11 // pred_check
          %p199 = pneg %p116
        $region14: #{tpu_custom_call.1} parent=11 // pred_check_branch
          %201 = sbr.rel (%p199) target = $region16
        $region15: #{tpu_custom_call.1} parent=11 // pred_region
          _
        $region16: #{tpu_custom_call.1} parent=11 // pred_fallthru
          _
        // Predicated region
        $region17: #{tpu_custom_call.1} parent=11 // pred_check
          %p202 = pneg %p137
        $region18: #{tpu_custom_call.1} parent=11 // pred_check_branch
          %204 = sbr.rel (%p202) target = $region20
        $region19: #{tpu_custom_call.1} parent=11 // pred_region
          _
        $region20: #{tpu_custom_call.1} parent=11 // pred_fallthru
          _
        // Predicated region
        $region21: #{tpu_custom_call.1} parent=11 // pred_check
          %p205 = pneg %p158
        $region22: #{tpu_custom_call.1} parent=11 // pred_check_branch
          %207 = sbr.rel (%p205) target = $region24
        $region23: #{tpu_custom_call.1} parent=11 // pred_region
          _
        $region24: #{tpu_custom_call.1} parent=11 // pred_fallthru
          _
      $region12: #{tpu_custom_call.1} parent=5 // pred_fallthru
        _
      %p208 = scmp.lt.s32.totalorder %s17, 2
      // Predicated region
      $region25: #{tpu_custom_call.1} parent=5 // pred_check
        %p209 = pneg %p208
      $region26: #{tpu_custom_call.1} parent=5 // pred_check_branch
        %211 = sbr.rel (%p209) target = $region28
      $region27: #{tpu_custom_call.1} parent=5 // pred_region
        // Predicated region
        $region29: #{tpu_custom_call.1} parent=27 // pred_check
          %p212 = pneg %p37
        $region30: #{tpu_custom_call.1} parent=27 // pred_check_branch
          %214 = sbr.rel (%p212) target = $region32
        $region31: #{tpu_custom_call.1} parent=27 // pred_region
          %s215 = smul.u32 16, %s17
          %p216 = scmp.lt.s32.totalorder %s215, 31
          %s217 = scalar_select %p216, %s215, 31
          %s218 = smul.addr %s217, 2
          %s219 = scalar_lea.vmem %s0, %s218
          %s220 = smul.u32 16, %s17
        $region32: #{tpu_custom_call.1} parent=27 // pred_fallthru
          _
        // Predicated region
        $region33: #{tpu_custom_call.1} parent=27 // pred_check
          %p221 = pneg %p63
        $region34: #{tpu_custom_call.1} parent=27 // pred_check_branch
          %223 = sbr.rel (%p221) target = $region36
        $region35: #{tpu_custom_call.1} parent=27 // pred_region
          %s224 = smul.u32 16, %s17
          %p225 = scmp.lt.s32.totalorder %s224, 31
          %s226 = scalar_select %p225, %s224, 31
          %s227 = scalar_lea.vmem %s1, %s226
          %s228 = smul.u32 16, %s17
        $region36: #{tpu_custom_call.1} parent=27 // pred_fallthru
          _
        // Predicated region
        $region37: #{tpu_custom_call.1} parent=27 // pred_check
          %p229 = pneg %p89
        $region38: #{tpu_custom_call.1} parent=27 // pred_check_branch
          %231 = sbr.rel (%p229) target = $region40
        $region39: #{tpu_custom_call.1} parent=27 // pred_region
          %s232 = smul.u32 16, %s17
          %p233 = scmp.lt.s32.totalorder %s232, 31
          %s234 = scalar_select %p233, %s232, 31
          %s235 = smul.addr %s234, 2
          %s236 = scalar_lea.vmem %s2, %s235
          %s237 = smul.u32 16, %s17
        $region40: #{tpu_custom_call.1} parent=27 // pred_fallthru
          _
      $region28: #{tpu_custom_call.1} parent=5 // pred_fallthru
        _
      %p238 = scmp.le.s32.totalorder 1, %s17
      %p239 = scmp.lt.s32.totalorder %s17, 3
      %p240 = pnand %p238, %p239
      %p241 = pneg %p240
      // Predicated region
      $region41: #{tpu_custom_call.1} parent=5 // pred_check
        _
      $region42: #{tpu_custom_call.1} parent=5 // pred_check_branch
        %243 = sbr.rel (%p240) target = $region44
      $region43: #{tpu_custom_call.1} parent=5 // pred_region
        %s244 = ssub.s32 %s17, 1
        %s245 = smul.u32 16, %s22
        %p246 = scmp.lt.s32.totalorder %s245, 31
        %s247 = scalar_select %p246, %s245, 31
        %s248 = smul.addr %s247, 2
        %s249 = scalar_lea.vmem %s0, %s248
        %p250 = pneg %p43
        %p251 = pneg %p40
        %s252 = smul.u32 16, %s22
        %p253 = scmp.lt.s32.totalorder %s252, 31
        %s254 = scalar_select %p253, %s252, 31
        %s255 = scalar_lea.vmem %s1, %s254
        %p256 = pneg %p69
        %p257 = pneg %p66
        %s258 = smul.u32 16, %s22
        %p259 = scmp.lt.s32.totalorder %s258, 31
        %s260 = scalar_select %p259, %s258, 31
        %s261 = smul.addr %s260, 2
        %s262 = scalar_lea.vmem %s2, %s261
        %p263 = pneg %p95
        %p264 = pneg %p92
        %p265 = pneg %p116
        %p266 = pneg %p113
        %p267 = pneg %p137
        %p268 = pneg %p134
        %p269 = pneg %p158
        %p270 = pneg %p155
        %p271 = pneg %p184
        %p272 = pneg %p181
        %s273 = sand.u32 %s171, 1
        %s274 = scalar_lea.sflag [#allocation5], %s273
        %s275 = sand.u32 %s171, 1
        %s276 = smul.addr %s275, 128
        %s277 = scalar_lea.vmem [#allocation4], %s276
        %s278 = smul.u32 16, %s22
        %p279 = scmp.lt.s32.totalorder %s278, 31
        %s280 = scalar_select %p279, %s278, 31
        %s281 = smul.addr %s280, 2
        %s282 = scalar_lea.vmem %s0, %s281
        %s283 = smul.u32 16, %s22
        %s284 = smul.u32 16, %s22
        %p285 = scmp.lt.s32.totalorder %s284, 31
        %s286 = scalar_select %p285, %s284, 31
        %s287 = scalar_lea.vmem %s1, %s286
        %s288 = smul.u32 16, %s22
        %s289 = smul.u32 16, %s22
        %p290 = scmp.lt.s32.totalorder %s289, 31
        %s291 = scalar_select %p290, %s289, 31
        %s292 = smul.addr %s291, 2
        %s293 = scalar_lea.vmem %s2, %s292
        %s294 = smul.u32 16, %s22
        %s295 = smul.u32 16, %s22
        %v296 = vld [vmem:[%s4] sm:$0x1]
        %v297 = vld [vmem:[#allocation3] sm:$0x1]
        %v298 = vlaneseq
        %vm299 = vcmp.ge.s32.totalorder %v298, 0
        %vm300 = vcmp.lt.s32.totalorder %v298, 512
        %vm301 = vmand %vm299, %vm300
        %s302 = scalar_lea.vmem [#allocation2], 4
        %303 = vst.msk [vmem:[%s302] ss:$8 sm:$0xf] %vm301, 1.0
        %304 = vst.msk [vmem:[%s302] ss:$8 sm:$0x0] %vm301, 1.0
        %305 = vst [vmem:[#allocation2] sm:$0xc0] 0.0
        %306 = vst [vmem:[#allocation2 + $0x8] sm:$0xc0] 0.0
        %307 = vst [vmem:[#allocation2 + $0x10] sm:$0xc0] 0.0
        %308 = vst [vmem:[#allocation2 + $0x18] sm:$0xc0] 0.0
        loop: start=0, step=1, limit=4
        $region45: #{tpu_custom_call.1} parent=43 // loop_pre_header
          _
        $region46: #{tpu_custom_call.1} parent=43 // loop_header
          %s310 = sphi 0, %s314
          %p311 = scmp.ge.s32.totalorder %s310, 4
        $region47: #{tpu_custom_call.1} parent=43 // loop_header_branch
          %313 = sbr.rel (%p311) target = $region51
        $region48: #{tpu_custom_call.1} parent=43 // loop_body
          %s315 = smul.u32 %s310, 512
          %s316 = sshra.s32 %s315, 7
          %s317 = sand.u32 %s315, 127
          %s318 = scalar_lea.vmem %s287, %s316
          %v319 = vld [vmem:[%s318] sm:$0xf]
          %v320 = vunpack.c.l.bf16 %v319
          %s321 = smul.addr %s316, 2
          %s322 = scalar_lea.vmem %s282, %s321
          %v323 = vld [vmem:[%s322] sm:$0xff]
          %v324 = vunpack.c.l.bf16 %v323
          %v325 = vunpack.c.h.bf16 %v323
          %v328 = vcombine.high %v324, %v324
          %v329 = vcombine.high %v325, %v325
          %332 = vst [vmem:[#allocation2] sm:$0xf] %v324
          %333 = vst [vmem:[#allocation2 + $0x8] sm:$0xf] %v328
          %334 = vst [vmem:[#allocation2 + $0x10] sm:$0xf] %v325
          %335 = vst [vmem:[#allocation2 + $0x18] sm:$0xf] %v329
          %v338 = vunpack.c.l.s4 1966171168
          %v339 = vunpack.c.0.s8 %v338
          %v340 = vlaneseq
          %v341 = vshrl.u32 %v340, 7
          %v342 = vsub.s32 %v339, %v341
          %v343 = vrot.slane %v320, %v342
          %s345 = scalar_lea.vmem [#allocation2], 5
          %346 = vst.msk [vmem:[%s345] ss:$8 sm:$0xf] %vm301, %v343
          %347 = vst.msk [vmem:[%s345] ss:$8 sm:$0x0] %vm301, %v343
          %v348 = vld [vmem:[%s3] sm:$0xff]
          %v349 = vld [vmem:[%s3 + $0x8] sm:$0xff]
          %v350 = vld [vmem:[%s3 + $0x10] sm:$0xff]
          %v351 = vld [vmem:[%s3 + $0x18] sm:$0xff]
          %v352 = vld [vmem:[#allocation2] sm:$0xff]
          %v353 = vld [vmem:[#allocation2 + $0x8] sm:$0xff]
          %v354 = vld [vmem:[#allocation2 + $0x10] sm:$0xff]
          %v355 = vld [vmem:[#allocation2 + $0x18] sm:$0xff]
          %vm356 = vcmask 64512
          %v358 = vsel %vm356, %v348, 0
          %v361 = vsel %vm356, %v349, 0
          %v364 = vsel %vm356, %v350, 0
          %v367 = vsel %vm356, %v351, 0
          %369 = vmatprep.subr.mxu0 %v353
          %370 = vmatpush1.msra.mxu0 %v352
          %371 = vmatprep.subr.mxu0 0.0
          %372 = vmatpush1.msra.mxu0 0.0
          %373 = vmatprep.subr.mxu0 0.0
          %374 = vmatpush1.msra.mxu0 0.0
          %375 = vmatprep.subr.mxu0 0.0
          %376 = vmatpush1.msra.mxu0 0.0
          %377 = vmatprep.subr.mxu0 0.0
          %378 = vmatpush1.msra.mxu0 0.0
          %379 = vmatprep.subr.mxu0 0.0
          %380 = vmatpush1.msra.mxu0 0.0
          %381 = vmatprep.subr.mxu0 0.0
          %382 = vmatpush1.msra.mxu0 0.0
          %383 = vmatprep.subr.mxu0 0.0
          %384 = vmatpush1.msra.mxu0 0.0
          %385 = vmatprep.subr.mxu0 0.0
          %386 = vmatpush1.msra.mxu0 0.0
          %387 = vmatprep.subr.mxu0 0.0
          %388 = vmatpush1.msra.mxu0 0.0
          %389 = vmatprep.subr.mxu0 0.0
          %390 = vmatpush1.msra.mxu0 0.0
          %391 = vmatprep.subr.mxu0 0.0
          %392 = vmatpush1.msra.mxu0 0.0
          %393 = vmatprep.subr.mxu0 0.0
          %394 = vmatpush1.msra.mxu0 0.0
          %395 = vmatprep.subr.mxu0 0.0
          %396 = vmatpush1.msra.mxu0 0.0
          %397 = vmatprep.subr.mxu0 0.0
          %398 = vmatpush1.msra.mxu0 0.0
          %399 = vmatprep.subr.mxu0 0.0
          %400 = vmatpush1.msra.mxu0 0.0
          %401 = vmatprep.subr.mxu0 0.0
          %402 = vmatpush1.msra.mxu0 0.0
          %403 = vmatprep.subr.mxu0 0.0
          %404 = vmatpush1.msra.mxu0 0.0
          %405 = vmatprep.subr.mxu0 0.0
          %406 = vmatpush1.msra.mxu0 0.0
          %407 = vmatprep.subr.mxu0 0.0
          %408 = vmatpush1.msra.mxu0 0.0
          %409 = vmatprep.subr.mxu0 0.0
          %410 = vmatpush1.msra.mxu0 0.0
          %411 = vmatprep.subr.mxu0 0.0
          %412 = vmatpush1.msra.mxu0 0.0
          %413 = vmatprep.subr.mxu0 0.0
          %414 = vmatpush1.msra.mxu0 0.0
          %415 = vmatprep.subr.mxu0 0.0
          %416 = vmatpush1.msra.mxu0 0.0
          %417 = vmatprep.subr.mxu0 0.0
          %418 = vmatpush1.msra.mxu0 0.0
          %419 = vmatprep.subr.mxu0 0.0
          %420 = vmatpush1.msra.mxu0 0.0
          %421 = vmatprep.subr.mxu0 0.0
          %422 = vmatpush1.msra.mxu0 0.0
          %423 = vmatprep.subr.mxu0 0.0
          %424 = vmatpush1.msra.mxu0 0.0
          %425 = vmatprep.subr.mxu0 0.0
          %426 = vmatpush1.msra.mxu0 0.0
          %427 = vmatprep.subr.mxu0 0.0
          %428 = vmatpush1.msra.mxu0 0.0
          %429 = vmatprep.subr.mxu0 0.0
          %430 = vmatpush1.msra.mxu0 0.0
          %431 = vmatprep.subr.mxu0 0.0
          %432 = vmatpush1.msra.mxu0 0.0
          %433 = vmatprep.mubr.f32.mxu0 0.0
          %434 = vmatmul.mubr.f32.gmra.mrb[0].mxu0 %v358
          %v435 = vpop.f32.mrb[0].mxu0
          %v436 = vadd.f32 0.0, %v435
          %v437 = vpop.f32.mrb[0].mxu0
          %v438 = vadd.f32 0.0, %v437
          %439 = vmatprep.mubr.f32.mxu0 0.0
          %440 = vmatmul.mubr.f32.gmra.mrb[0].mxu0 %v361
          %v441 = vpop.f32.mrb[0].mxu0
          %v442 = vadd.f32 0.0, %v441
          %v443 = vpop.f32.mrb[0].mxu0
          %v444 = vadd.f32 0.0, %v443
          %445 = vmatprep.mubr.f32.mxu0 0.0
          %446 = vmatmul.mubr.f32.gmra.mrb[0].mxu0 %v364
          %v447 = vpop.f32.mrb[0].mxu0
          %v448 = vadd.f32 0.0, %v447
          %v449 = vpop.f32.mrb[0].mxu0
          %v450 = vadd.f32 0.0, %v449
          %451 = vmatprep.mubr.f32.mxu0 0.0
          %452 = vmatmul.mubr.f32.gmra.mrb[0].mxu0 %v367
          %v453 = vpop.f32.mrb[0].mxu0
          %v454 = vadd.f32 0.0, %v453
          %v455 = vpop.f32.mrb[0].mxu0
          %v456 = vadd.f32 0.0, %v455
          %457 = vdwg.mxu0
          %458 = vmatprep.subr.mxu0 %v355
          %459 = vmatpush1.msra.mxu0 %v354
          %460 = vmatprep.subr.mxu0 0.0
          %461 = vmatpush1.msra.mxu0 0.0
          %462 = vmatprep.subr.mxu0 0.0
          %463 = vmatpush1.msra.mxu0 0.0
          %464 = vmatprep.subr.mxu0 0.0
          %465 = vmatpush1.msra.mxu0 0.0
          %466 = vmatprep.subr.mxu0 0.0
          %467 = vmatpush1.msra.mxu0 0.0
          %468 = vmatprep.subr.mxu0 0.0
          %469 = vmatpush1.msra.mxu0 0.0
          %470 = vmatprep.subr.mxu0 0.0
          %471 = vmatpush1.msra.mxu0 0.0
          %472 = vmatprep.subr.mxu0 0.0
          %473 = vmatpush1.msra.mxu0 0.0
          %474 = vmatprep.subr.mxu0 0.0
          %475 = vmatpush1.msra.mxu0 0.0
          %476 = vmatprep.subr.mxu0 0.0
          %477 = vmatpush1.msra.mxu0 0.0
          %478 = vmatprep.subr.mxu0 0.0
          %479 = vmatpush1.msra.mxu0 0.0
          %480 = vmatprep.subr.mxu0 0.0
          %481 = vmatpush1.msra.mxu0 0.0
          %482 = vmatprep.subr.mxu0 0.0
          %483 = vmatpush1.msra.mxu0 0.0
          %484 = vmatprep.subr.mxu0 0.0
          %485 = vmatpush1.msra.mxu0 0.0
          %486 = vmatprep.subr.mxu0 0.0
          %487 = vmatpush1.msra.mxu0 0.0
          %488 = vmatprep.subr.mxu0 0.0
          %489 = vmatpush1.msra.mxu0 0.0
          %490 = vmatprep.subr.mxu0 0.0
          %491 = vmatpush1.msra.mxu0 0.0
          %492 = vmatprep.subr.mxu0 0.0
          %493 = vmatpush1.msra.mxu0 0.0
          %494 = vmatprep.subr.mxu0 0.0
          %495 = vmatpush1.msra.mxu0 0.0
          %496 = vmatprep.subr.mxu0 0.0
          %497 = vmatpush1.msra.mxu0 0.0
          %498 = vmatprep.subr.mxu0 0.0
          %499 = vmatpush1.msra.mxu0 0.0
          %500 = vmatprep.subr.mxu0 0.0
          %501 = vmatpush1.msra.mxu0 0.0
          %502 = vmatprep.subr.mxu0 0.0
          %503 = vmatpush1.msra.mxu0 0.0
          %504 = vmatprep.subr.mxu0 0.0
          %505 = vmatpush1.msra.mxu0 0.0
          %506 = vmatprep.subr.mxu0 0.0
          %507 = vmatpush1.msra.mxu0 0.0
          %508 = vmatprep.subr.mxu0 0.0
          %509 = vmatpush1.msra.mxu0 0.0
          %510 = vmatprep.subr.mxu0 0.0
          %511 = vmatpush1.msra.mxu0 0.0
          %512 = vmatprep.subr.mxu0 0.0
          %513 = vmatpush1.msra.mxu0 0.0
          %514 = vmatprep.subr.mxu0 0.0
          %515 = vmatpush1.msra.mxu0 0.0
          %516 = vmatprep.subr.mxu0 0.0
          %517 = vmatpush1.msra.mxu0 0.0
          %518 = vmatprep.subr.mxu0 0.0
          %519 = vmatpush1.msra.mxu0 0.0
          %520 = vmatprep.subr.mxu0 0.0
          %521 = vmatpush1.msra.mxu0 0.0
          %522 = vmatprep.mubr.f32.mxu0 0.0
          %523 = vmatmul.mubr.f32.gmra.mrb[0].mxu0 %v358
          %v524 = vpop.f32.mrb[0].mxu0
          %v525 = vadd.f32 0.0, %v524
          %v526 = vpop.f32.mrb[0].mxu0
          %v527 = vadd.f32 0.0, %v526
          %528 = vmatprep.mubr.f32.mxu0 0.0
          %529 = vmatmul.mubr.f32.gmra.mrb[0].mxu0 %v361
          %v530 = vpop.f32.mrb[0].mxu0
          %v531 = vadd.f32 0.0, %v530
          %v532 = vpop.f32.mrb[0].mxu0
          %v533 = vadd.f32 0.0, %v532
          %534 = vmatprep.mubr.f32.mxu0 0.0
          %535 = vmatmul.mubr.f32.gmra.mrb[0].mxu0 %v364
          %v536 = vpop.f32.mrb[0].mxu0
          %v537 = vadd.f32 0.0, %v536
          %v538 = vpop.f32.mrb[0].mxu0
          %v539 = vadd.f32 0.0, %v538
          %540 = vmatprep.mubr.f32.mxu0 0.0
          %541 = vmatmul.mubr.f32.gmra.mrb[0].mxu0 %v367
          %v542 = vpop.f32.mrb[0].mxu0
          %v543 = vadd.f32 0.0, %v542
          %v544 = vpop.f32.mrb[0].mxu0
          %v545 = vadd.f32 0.0, %v544
          %546 = vdwg.mxu0
          %v547 = vmax.f32 %v436, 0.0
          %v548 = vmax.f32 %v438, 0.0
          %v549 = vmax.f32 %v525, 0.0
          %v550 = vmax.f32 %v527, 0.0
          %v551 = vmax.f32 %v442, 0.0
          %v552 = vmax.f32 %v444, 0.0
          %v553 = vmax.f32 %v531, 0.0
          %v554 = vmax.f32 %v533, 0.0
          %v555 = vmax.f32 %v448, 0.0
          %v556 = vmax.f32 %v450, 0.0
          %v557 = vmax.f32 %v537, 0.0
          %v558 = vmax.f32 %v539, 0.0
          %v559 = vmax.f32 %v454, 0.0
          %v560 = vmax.f32 %v456, 0.0
          %v561 = vmax.f32 %v543, 0.0
          %v562 = vmax.f32 %v545, 0.0
          %564 = vset.pattern.permute.xlu0 0
          %565 = vperm.xlu0 %564, %v297
          %v566 = vpop.permute.xlu0 %565
          %v568 = vlaneseq
          %v569 = vshrl.u32 %v568, 7
          %v570 = vsub.s32 0, %v569
          %v571 = vrot.slane %v566, %v570
          %vm572 = vcmask 261120
          %v574 = vsel %vm572, %v296, 0
          %576 = vmatprep.subr.mxu0 %v548
          %577 = vmatpush1.msra.mxu0 %v547
          %578 = vmatprep.subr.mxu0 %v552
          %579 = vmatpush1.msra.mxu0 %v551
          %580 = vmatprep.subr.mxu0 %v556
          %581 = vmatpush1.msra.mxu0 %v555
          %582 = vmatprep.subr.mxu0 %v560
          %583 = vmatpush1.msra.mxu0 %v559
          %584 = vmatprep.subr.mxu0 0.0
          %585 = vmatpush1.msra.mxu0 0.0
          %586 = vmatprep.subr.mxu0 0.0
          %587 = vmatpush1.msra.mxu0 0.0
          %588 = vmatprep.subr.mxu0 0.0
          %589 = vmatpush1.msra.mxu0 0.0
          %590 = vmatprep.subr.mxu0 0.0
          %591 = vmatpush1.msra.mxu0 0.0
          %592 = vmatprep.subr.mxu0 0.0
          %593 = vmatpush1.msra.mxu0 0.0
          %594 = vmatprep.subr.mxu0 0.0
          %595 = vmatpush1.msra.mxu0 0.0
          %596 = vmatprep.subr.mxu0 0.0
          %597 = vmatpush1.msra.mxu0 0.0
          %598 = vmatprep.subr.mxu0 0.0
          %599 = vmatpush1.msra.mxu0 0.0
          %600 = vmatprep.subr.mxu0 0.0
          %601 = vmatpush1.msra.mxu0 0.0
          %602 = vmatprep.subr.mxu0 0.0
          %603 = vmatpush1.msra.mxu0 0.0
          %604 = vmatprep.subr.mxu0 0.0
          %605 = vmatpush1.msra.mxu0 0.0
          %606 = vmatprep.subr.mxu0 0.0
          %607 = vmatpush1.msra.mxu0 0.0
          %608 = vmatprep.subr.mxu0 0.0
          %609 = vmatpush1.msra.mxu0 0.0
          %610 = vmatprep.subr.mxu0 0.0
          %611 = vmatpush1.msra.mxu0 0.0
          %612 = vmatprep.subr.mxu0 0.0
          %613 = vmatpush1.msra.mxu0 0.0
          %614 = vmatprep.subr.mxu0 0.0
          %615 = vmatpush1.msra.mxu0 0.0
          %616 = vmatprep.subr.mxu0 0.0
          %617 = vmatpush1.msra.mxu0 0.0
          %618 = vmatprep.subr.mxu0 0.0
          %619 = vmatpush1.msra.mxu0 0.0
          %620 = vmatprep.subr.mxu0 0.0
          %621 = vmatpush1.msra.mxu0 0.0
          %622 = vmatprep.subr.mxu0 0.0
          %623 = vmatpush1.msra.mxu0 0.0
          %624 = vmatprep.subr.mxu0 0.0
          %625 = vmatpush1.msra.mxu0 0.0
          %626 = vmatprep.subr.mxu0 0.0
          %627 = vmatpush1.msra.mxu0 0.0
          %628 = vmatprep.subr.mxu0 0.0
          %629 = vmatpush1.msra.mxu0 0.0
          %630 = vmatprep.subr.mxu0 0.0
          %631 = vmatpush1.msra.mxu0 0.0
          %632 = vmatprep.subr.mxu0 0.0
          %633 = vmatpush1.msra.mxu0 0.0
          %634 = vmatprep.subr.mxu0 0.0
          %635 = vmatpush1.msra.mxu0 0.0
          %636 = vmatprep.subr.mxu0 0.0
          %637 = vmatpush1.msra.mxu0 0.0
          %638 = vmatprep.subr.mxu0 0.0
          %639 = vmatpush1.msra.mxu0 0.0
          %640 = vmatprep.mubr.f32.mxu0 0.0
          %641 = vmatmul.mubr.f32.gmra.mrb[0].mxu0 %v574
          %v642 = vpop.f32.mrb[0].mxu0
          %v643 = vadd.f32 %v571, %v642
          %v644 = vpop.f32.mrb[0].mxu0
          %v645 = vadd.f32 %v571, %v644
          %646 = vdwg.mxu0
          %647 = vmatprep.subr.mxu0 %v550
          %648 = vmatpush1.msra.mxu0 %v549
          %649 = vmatprep.subr.mxu0 %v554
          %650 = vmatpush1.msra.mxu0 %v553
          %651 = vmatprep.subr.mxu0 %v558
          %652 = vmatpush1.msra.mxu0 %v557
          %653 = vmatprep.subr.mxu0 %v562
          %654 = vmatpush1.msra.mxu0 %v561
          %655 = vmatprep.subr.mxu0 0.0
          %656 = vmatpush1.msra.mxu0 0.0
          %657 = vmatprep.subr.mxu0 0.0
          %658 = vmatpush1.msra.mxu0 0.0
          %659 = vmatprep.subr.mxu0 0.0
          %660 = vmatpush1.msra.mxu0 0.0
          %661 = vmatprep.subr.mxu0 0.0
          %662 = vmatpush1.msra.mxu0 0.0
          %663 = vmatprep.subr.mxu0 0.0
          %664 = vmatpush1.msra.mxu0 0.0
          %665 = vmatprep.subr.mxu0 0.0
          %666 = vmatpush1.msra.mxu0 0.0
          %667 = vmatprep.subr.mxu0 0.0
          %668 = vmatpush1.msra.mxu0 0.0
          %669 = vmatprep.subr.mxu0 0.0
          %670 = vmatpush1.msra.mxu0 0.0
          %671 = vmatprep.subr.mxu0 0.0
          %672 = vmatpush1.msra.mxu0 0.0
          %673 = vmatprep.subr.mxu0 0.0
          %674 = vmatpush1.msra.mxu0 0.0
          %675 = vmatprep.subr.mxu0 0.0
          %676 = vmatpush1.msra.mxu0 0.0
          %677 = vmatprep.subr.mxu0 0.0
          %678 = vmatpush1.msra.mxu0 0.0
          %679 = vmatprep.subr.mxu0 0.0
          %680 = vmatpush1.msra.mxu0 0.0
          %681 = vmatprep.subr.mxu0 0.0
          %682 = vmatpush1.msra.mxu0 0.0
          %683 = vmatprep.subr.mxu0 0.0
          %684 = vmatpush1.msra.mxu0 0.0
          %685 = vmatprep.subr.mxu0 0.0
          %686 = vmatpush1.msra.mxu0 0.0
          %687 = vmatprep.subr.mxu0 0.0
          %688 = vmatpush1.msra.mxu0 0.0
          %689 = vmatprep.subr.mxu0 0.0
          %690 = vmatpush1.msra.mxu0 0.0
          %691 = vmatprep.subr.mxu0 0.0
          %692 = vmatpush1.msra.mxu0 0.0
          %693 = vmatprep.subr.mxu0 0.0
          %694 = vmatpush1.msra.mxu0 0.0
          %695 = vmatprep.subr.mxu0 0.0
          %696 = vmatpush1.msra.mxu0 0.0
          %697 = vmatprep.subr.mxu0 0.0
          %698 = vmatpush1.msra.mxu0 0.0
          %699 = vmatprep.subr.mxu0 0.0
          %700 = vmatpush1.msra.mxu0 0.0
          %701 = vmatprep.subr.mxu0 0.0
          %702 = vmatpush1.msra.mxu0 0.0
          %703 = vmatprep.subr.mxu0 0.0
          %704 = vmatpush1.msra.mxu0 0.0
          %705 = vmatprep.subr.mxu0 0.0
          %706 = vmatpush1.msra.mxu0 0.0
          %707 = vmatprep.subr.mxu0 0.0
          %708 = vmatpush1.msra.mxu0 0.0
          %709 = vmatprep.subr.mxu0 0.0
          %710 = vmatpush1.msra.mxu0 0.0
          %711 = vmatprep.mubr.f32.mxu0 0.0
          %712 = vmatmul.mubr.f32.gmra.mrb[0].mxu0 %v574
          %v713 = vpop.f32.mrb[0].mxu0
          %v714 = vadd.f32 %v571, %v713
          %v715 = vpop.f32.mrb[0].mxu0
          %v716 = vadd.f32 %v571, %v715
          %717 = vdwg.mxu0
          %s718 = smul.addr %s316, 2
          %s719 = scalar_lea.vmem %s293, %s718
          %v720 = vld [vmem:[%s719] sm:$0x55]
          %v721 = vunpack.c.l.bf16 %v720
          %v722 = vunpack.c.h.bf16 %v720
          %v723 = vmul.f32 %v643, 0.12172337
          %v724 = vmul.f32 %v645, 0.12172337
          %v725 = vmul.f32 %v714, 0.12172337
          %v726 = vmul.f32 %v716, 0.12172337
          %v727 = vmul.f32 %v320, 0.9832122
          %v729 = vlaneseq
          %v730 = vshrl.u32 %v729, 7
          %v731 = vsub.s32 0, %v730
          %v732 = vrot.slane %v727, %v731
          %v733 = vlaneseq
          %v734 = vshrl.u32 %v733, 7
          %v735 = vsub.s32 2, %v734
          %v736 = vrot.slane %v727, %v735
          %v737 = vlaneseq
          %v738 = vshrl.u32 %v737, 7
          %v739 = vsub.s32 4, %v738
          %v740 = vrot.slane %v727, %v739
          %v741 = vlaneseq
          %v742 = vshrl.u32 %v741, 7
          %v743 = vsub.s32 6, %v742
          %v744 = vrot.slane %v727, %v743
          %v749 = vadd.f32 %v723, %v732
          %v750 = vadd.f32 %v724, %v736
          %v751 = vadd.f32 %v725, %v740
          %v752 = vadd.f32 %v726, %v744
          %v753 = vmul.f32 %v721, 0.09583121
          %v754 = vmul.f32 %v722, 0.09583121
          %v757 = vlaneseq
          %v758 = vshrl.u32 %v757, 7
          %v759 = vsub.s32 0, %v758
          %v760 = vrot.slane %v753, %v759
          %v761 = vlaneseq
          %v762 = vshrl.u32 %v761, 7
          %v763 = vsub.s32 4, %v762
          %v764 = vrot.slane %v753, %v763
          %v765 = vlaneseq
          %v766 = vshrl.u32 %v765, 7
          %v767 = vsub.s32 0, %v766
          %v768 = vrot.slane %v754, %v767
          %v769 = vlaneseq
          %v770 = vshrl.u32 %v769, 7
          %v771 = vsub.s32 4, %v770
          %v772 = vrot.slane %v754, %v771
          %v777 = vadd.f32 %v749, %v760
          %v778 = vadd.f32 %v750, %v764
          %v779 = vadd.f32 %v751, %v768
          %v780 = vadd.f32 %v752, %v772
          %v785 = vcombine.low %v777, %v778
          %v786 = vcombine.low %v779, %v780
          %v788 = vunpack.c.l.s4 1966171168
          %v789 = vunpack.c.0.s8 %v788
          %v790 = vlaneseq
          %v791 = vshrl.u32 %v790, 7
          %v792 = vsub.s32 %v789, %v791
          %v793 = vrot.slane %v785, %v792
          %v795 = vunpack.c.l.s4 1966171168
          %v796 = vunpack.c.0.s8 %v795
          %v797 = vlaneseq
          %v798 = vshrl.u32 %v797, 7
          %v799 = vsub.s32 %v796, %v798
          %v800 = vrot.slane %v786, %v799
          %v801 = vcombine.low %v793, %v800
          %v803 = vunpack.c.l.s4 1966171168
          %v804 = vunpack.c.0.s8 %v803
          %v805 = vlaneseq
          %v806 = vshrl.u32 %v805, 7
          %v807 = vsub.s32 %v804, %v806
          %v808 = vrot.slane %v801, %v807
          %810 = vst.msk [vmem:[%s345] ss:$8 sm:$0xf] %vm301, %v808
          %811 = vst.msk [vmem:[%s345] ss:$8 sm:$0x0] %vm301, %v808
          %s812 = scalar_lea.vmem %s3, 32
          %v813 = vld [vmem:[%s812] sm:$0xff]
          %v814 = vld [vmem:[%s812 + $0x8] sm:$0xff]
          %v815 = vld [vmem:[%s812 + $0x10] sm:$0xff]
          %v816 = vld [vmem:[%s812 + $0x18] sm:$0xff]
          %v817 = vld [vmem:[#allocation2] sm:$0xff]
          %v818 = vld [vmem:[#allocation2 + $0x8] sm:$0xff]
          %v819 = vld [vmem:[#allocation2 + $0x10] sm:$0xff]
          %v820 = vld [vmem:[#allocation2 + $0x18] sm:$0xff]
          %v822 = vsel %vm356, %v813, 0
          %v825 = vsel %vm356, %v814, 0
          %v828 = vsel %vm356, %v815, 0
          %v831 = vsel %vm356, %v816, 0
          %833 = vmatprep.subr.mxu0 %v818
          %834 = vmatpush1.msra.mxu0 %v817
          %835 = vmatprep.subr.mxu0 0.0
          %836 = vmatpush1.msra.mxu0 0.0
          %837 = vmatprep.subr.mxu0 0.0
          %838 = vmatpush1.msra.mxu0 0.0
          %839 = vmatprep.subr.mxu0 0.0
          %840 = vmatpush1.msra.mxu0 0.0
          %841 = vmatprep.subr.mxu0 0.0
          %842 = vmatpush1.msra.mxu0 0.0
          %843 = vmatprep.subr.mxu0 0.0
          %844 = vmatpush1.msra.mxu0 0.0
          %845 = vmatprep.subr.mxu0 0.0
          %846 = vmatpush1.msra.mxu0 0.0
          %847 = vmatprep.subr.mxu0 0.0
          %848 = vmatpush1.msra.mxu0 0.0
          %849 = vmatprep.subr.mxu0 0.0
          %850 = vmatpush1.msra.mxu0 0.0
          %851 = vmatprep.subr.mxu0 0.0
          %852 = vmatpush1.msra.mxu0 0.0
          %853 = vmatprep.subr.mxu0 0.0
          %854 = vmatpush1.msra.mxu0 0.0
          %855 = vmatprep.subr.mxu0 0.0
          %856 = vmatpush1.msra.mxu0 0.0
          %857 = vmatprep.subr.mxu0 0.0
          %858 = vmatpush1.msra.mxu0 0.0
          %859 = vmatprep.subr.mxu0 0.0
          %860 = vmatpush1.msra.mxu0 0.0
          %861 = vmatprep.subr.mxu0 0.0
          %862 = vmatpush1.msra.mxu0 0.0
          %863 = vmatprep.subr.mxu0 0.0
          %864 = vmatpush1.msra.mxu0 0.0
          %865 = vmatprep.subr.mxu0 0.0
          %866 = vmatpush1.msra.mxu0 0.0
          %867 = vmatprep.subr.mxu0 0.0
          %868 = vmatpush1.msra.mxu0 0.0
          %869 = vmatprep.subr.mxu0 0.0
          %870 = vmatpush1.msra.mxu0 0.0
          %871 = vmatprep.subr.mxu0 0.0
          %872 = vmatpush1.msra.mxu0 0.0
          %873 = vmatprep.subr.mxu0 0.0
          %874 = vmatpush1.msra.mxu0 0.0
          %875 = vmatprep.subr.mxu0 0.0
          %876 = vmatpush1.msra.mxu0 0.0
          %877 = vmatprep.subr.mxu0 0.0
          %878 = vmatpush1.msra.mxu0 0.0
          %879 = vmatprep.subr.mxu0 0.0
          %880 = vmatpush1.msra.mxu0 0.0
          %881 = vmatprep.subr.mxu0 0.0
          %882 = vmatpush1.msra.mxu0 0.0
          %883 = vmatprep.subr.mxu0 0.0
          %884 = vmatpush1.msra.mxu0 0.0
          %885 = vmatprep.subr.mxu0 0.0
          %886 = vmatpush1.msra.mxu0 0.0
          %887 = vmatprep.subr.mxu0 0.0
          %888 = vmatpush1.msra.mxu0 0.0
          %889 = vmatprep.subr.mxu0 0.0
          %890 = vmatpush1.msra.mxu0 0.0
          %891 = vmatprep.subr.mxu0 0.0
          %892 = vmatpush1.msra.mxu0 0.0
          %893 = vmatprep.subr.mxu0 0.0
          %894 = vmatpush1.msra.mxu0 0.0
          %895 = vmatprep.subr.mxu0 0.0
          %896 = vmatpush1.msra.mxu0 0.0
          %897 = vmatprep.mubr.f32.mxu0 0.0
          %898 = vmatmul.mubr.f32.gmra.mrb[0].mxu0 %v822
          %v899 = vpop.f32.mrb[0].mxu0
          %v900 = vadd.f32 0.0, %v899
          %v901 = vpop.f32.mrb[0].mxu0
          %v902 = vadd.f32 0.0, %v901
          %903 = vmatprep.mubr.f32.mxu0 0.0
          %904 = vmatmul.mubr.f32.gmra.mrb[0].mxu0 %v825
          %v905 = vpop.f32.mrb[0].mxu0
          %v906 = vadd.f32 0.0, %v905
          %v907 = vpop.f32.mrb[0].mxu0
          %v908 = vadd.f32 0.0, %v907
          %909 = vmatprep.mubr.f32.mxu0 0.0
          %910 = vmatmul.mubr.f32.gmra.mrb[0].mxu0 %v828
          %v911 = vpop.f32.mrb[0].mxu0
          %v912 = vadd.f32 0.0, %v911
          %v913 = vpop.f32.mrb[0].mxu0
          %v914 = vadd.f32 0.0, %v913
          %915 = vmatprep.mubr.f32.mxu0 0.0
          %916 = vmatmul.mubr.f32.gmra.mrb[0].mxu0 %v831
          %v917 = vpop.f32.mrb[0].mxu0
          %v918 = vadd.f32 0.0, %v917
          %v919 = vpop.f32.mrb[0].mxu0
          %v920 = vadd.f32 0.0, %v919
          %921 = vdwg.mxu0
          %922 = vmatprep.subr.mxu0 %v820
          %923 = vmatpush1.msra.mxu0 %v819
          %924 = vmatprep.subr.mxu0 0.0
          %925 = vmatpush1.msra.mxu0 0.0
          %926 = vmatprep.subr.mxu0 0.0
          %927 = vmatpush1.msra.mxu0 0.0
          %928 = vmatprep.subr.mxu0 0.0
          %929 = vmatpush1.msra.mxu0 0.0
          %930 = vmatprep.subr.mxu0 0.0
          %931 = vmatpush1.msra.mxu0 0.0
          %932 = vmatprep.subr.mxu0 0.0
          %933 = vmatpush1.msra.mxu0 0.0
          %934 = vmatprep.subr.mxu0 0.0
          %935 = vmatpush1.msra.mxu0 0.0
          %936 = vmatprep.subr.mxu0 0.0
          %937 = vmatpush1.msra.mxu0 0.0
          %938 = vmatprep.subr.mxu0 0.0
          %939 = vmatpush1.msra.mxu0 0.0
          %940 = vmatprep.subr.mxu0 0.0
          %941 = vmatpush1.msra.mxu0 0.0
          %942 = vmatprep.subr.mxu0 0.0
          %943 = vmatpush1.msra.mxu0 0.0
          %944 = vmatprep.subr.mxu0 0.0
          %945 = vmatpush1.msra.mxu0 0.0
          %946 = vmatprep.subr.mxu0 0.0
          %947 = vmatpush1.msra.mxu0 0.0
          %948 = vmatprep.subr.mxu0 0.0
          %949 = vmatpush1.msra.mxu0 0.0
          %950 = vmatprep.subr.mxu0 0.0
          %951 = vmatpush1.msra.mxu0 0.0
          %952 = vmatprep.subr.mxu0 0.0
          %953 = vmatpush1.msra.mxu0 0.0
          %954 = vmatprep.subr.mxu0 0.0
          %955 = vmatpush1.msra.mxu0 0.0
          %956 = vmatprep.subr.mxu0 0.0
          %957 = vmatpush1.msra.mxu0 0.0
          %958 = vmatprep.subr.mxu0 0.0
          %959 = vmatpush1.msra.mxu0 0.0
          %960 = vmatprep.subr.mxu0 0.0
          %961 = vmatpush1.msra.mxu0 0.0
          %962 = vmatprep.subr.mxu0 0.0
          %963 = vmatpush1.msra.mxu0 0.0
          %964 = vmatprep.subr.mxu0 0.0
          %965 = vmatpush1.msra.mxu0 0.0
          %966 = vmatprep.subr.mxu0 0.0
          %967 = vmatpush1.msra.mxu0 0.0
          %968 = vmatprep.subr.mxu0 0.0
          %969 = vmatpush1.msra.mxu0 0.0
          %970 = vmatprep.subr.mxu0 0.0
          %971 = vmatpush1.msra.mxu0 0.0
          %972 = vmatprep.subr.mxu0 0.0
          %973 = vmatpush1.msra.mxu0 0.0
          %974 = vmatprep.subr.mxu0 0.0
          %975 = vmatpush1.msra.mxu0 0.0
          %976 = vmatprep.subr.mxu0 0.0
          %977 = vmatpush1.msra.mxu0 0.0
          %978 = vmatprep.subr.mxu0 0.0
          %979 = vmatpush1.msra.mxu0 0.0
          %980 = vmatprep.subr.mxu0 0.0
          %981 = vmatpush1.msra.mxu0 0.0
          %982 = vmatprep.subr.mxu0 0.0
          %983 = vmatpush1.msra.mxu0 0.0
          %984 = vmatprep.subr.mxu0 0.0
          %985 = vmatpush1.msra.mxu0 0.0
          %986 = vmatprep.mubr.f32.mxu0 0.0
          %987 = vmatmul.mubr.f32.gmra.mrb[0].mxu0 %v822
          %v988 = vpop.f32.mrb[0].mxu0
          %v989 = vadd.f32 0.0, %v988
          %v990 = vpop.f32.mrb[0].mxu0
          %v991 = vadd.f32 0.0, %v990
          %992 = vmatprep.mubr.f32.mxu0 0.0
          %993 = vmatmul.mubr.f32.gmra.mrb[0].mxu0 %v825
          %v994 = vpop.f32.mrb[0].mxu0
          %v995 = vadd.f32 0.0, %v994
          %v996 = vpop.f32.mrb[0].mxu0
          %v997 = vadd.f32 0.0, %v996
          %998 = vmatprep.mubr.f32.mxu0 0.0
          %999 = vmatmul.mubr.f32.gmra.mrb[0].mxu0 %v828
          %v1000 = vpop.f32.mrb[0].mxu0
          %v1001 = vadd.f32 0.0, %v1000
          %v1002 = vpop.f32.mrb[0].mxu0
          %v1003 = vadd.f32 0.0, %v1002
          %1004 = vmatprep.mubr.f32.mxu0 0.0
          %1005 = vmatmul.mubr.f32.gmra.mrb[0].mxu0 %v831
          %v1006 = vpop.f32.mrb[0].mxu0
          %v1007 = vadd.f32 0.0, %v1006
          %v1008 = vpop.f32.mrb[0].mxu0
          %v1009 = vadd.f32 0.0, %v1008
          %1010 = vdwg.mxu0
          %v1011 = vmax.f32 %v900, 0.0
          %v1012 = vmax.f32 %v902, 0.0
          %v1013 = vmax.f32 %v989, 0.0
          %v1014 = vmax.f32 %v991, 0.0
          %v1015 = vmax.f32 %v906, 0.0
          %v1016 = vmax.f32 %v908, 0.0
          %v1017 = vmax.f32 %v995, 0.0
          %v1018 = vmax.f32 %v997, 0.0
          %v1019 = vmax.f32 %v912, 0.0
          %v1020 = vmax.f32 %v914, 0.0
          %v1021 = vmax.f32 %v1001, 0.0
          %v1022 = vmax.f32 %v1003, 0.0
          %v1023 = vmax.f32 %v918, 0.0
          %v1024 = vmax.f32 %v920, 0.0
          %v1025 = vmax.f32 %v1007, 0.0
          %v1026 = vmax.f32 %v1009, 0.0
          %1027 = vmatprep.subr.mxu0 %v1012
          %1028 = vmatpush1.msra.mxu0 %v1011
          %1029 = vmatprep.subr.mxu0 %v1016
          %1030 = vmatpush1.msra.mxu0 %v1015
          %1031 = vmatprep.subr.mxu0 %v1020
          %1032 = vmatpush1.msra.mxu0 %v1019
          %1033 = vmatprep.subr.mxu0 %v1024
          %1034 = vmatpush1.msra.mxu0 %v1023
          %1035 = vmatprep.subr.mxu0 0.0
          %1036 = vmatpush1.msra.mxu0 0.0
          %1037 = vmatprep.subr.mxu0 0.0
          %1038 = vmatpush1.msra.mxu0 0.0
          %1039 = vmatprep.subr.mxu0 0.0
          %1040 = vmatpush1.msra.mxu0 0.0
          %1041 = vmatprep.subr.mxu0 0.0
          %1042 = vmatpush1.msra.mxu0 0.0
          %1043 = vmatprep.subr.mxu0 0.0
          %1044 = vmatpush1.msra.mxu0 0.0
          %1045 = vmatprep.subr.mxu0 0.0
          %1046 = vmatpush1.msra.mxu0 0.0
          %1047 = vmatprep.subr.mxu0 0.0
          %1048 = vmatpush1.msra.mxu0 0.0
          %1049 = vmatprep.subr.mxu0 0.0
          %1050 = vmatpush1.msra.mxu0 0.0
          %1051 = vmatprep.subr.mxu0 0.0
          %1052 = vmatpush1.msra.mxu0 0.0
          %1053 = vmatprep.subr.mxu0 0.0
          %1054 = vmatpush1.msra.mxu0 0.0
          %1055 = vmatprep.subr.mxu0 0.0
          %1056 = vmatpush1.msra.mxu0 0.0
          %1057 = vmatprep.subr.mxu0 0.0
          %1058 = vmatpush1.msra.mxu0 0.0
          %1059 = vmatprep.subr.mxu0 0.0
          %1060 = vmatpush1.msra.mxu0 0.0
          %1061 = vmatprep.subr.mxu0 0.0
          %1062 = vmatpush1.msra.mxu0 0.0
          %1063 = vmatprep.subr.mxu0 0.0
          %1064 = vmatpush1.msra.mxu0 0.0
          %1065 = vmatprep.subr.mxu0 0.0
          %1066 = vmatpush1.msra.mxu0 0.0
          %1067 = vmatprep.subr.mxu0 0.0
          %1068 = vmatpush1.msra.mxu0 0.0
          %1069 = vmatprep.subr.mxu0 0.0
          %1070 = vmatpush1.msra.mxu0 0.0
          %1071 = vmatprep.subr.mxu0 0.0
          %1072 = vmatpush1.msra.mxu0 0.0
          %1073 = vmatprep.subr.mxu0 0.0
          %1074 = vmatpush1.msra.mxu0 0.0
          %1075 = vmatprep.subr.mxu0 0.0
          %1076 = vmatpush1.msra.mxu0 0.0
          %1077 = vmatprep.subr.mxu0 0.0
          %1078 = vmatpush1.msra.mxu0 0.0
          %1079 = vmatprep.subr.mxu0 0.0
          %1080 = vmatpush1.msra.mxu0 0.0
          %1081 = vmatprep.subr.mxu0 0.0
          %1082 = vmatpush1.msra.mxu0 0.0
          %1083 = vmatprep.subr.mxu0 0.0
          %1084 = vmatpush1.msra.mxu0 0.0
          %1085 = vmatprep.subr.mxu0 0.0
          %1086 = vmatpush1.msra.mxu0 0.0
          %1087 = vmatprep.subr.mxu0 0.0
          %1088 = vmatpush1.msra.mxu0 0.0
          %1089 = vmatprep.subr.mxu0 0.0
          %1090 = vmatpush1.msra.mxu0 0.0
          %1091 = vmatprep.mubr.f32.mxu0 0.0
          %1092 = vmatmul.mubr.f32.gmra.mrb[0].mxu0 %v574
          %v1093 = vpop.f32.mrb[0].mxu0
          %v1094 = vadd.f32 %v571, %v1093
          %v1095 = vpop.f32.mrb[0].mxu0
          %v1096 = vadd.f32 %v571, %v1095
          %1097 = vdwg.mxu0
          %1098 = vmatprep.subr.mxu0 %v1014
          %1099 = vmatpush1.msra.mxu0 %v1013
          %1100 = vmatprep.subr.mxu0 %v1018
          %1101 = vmatpush1.msra.mxu0 %v1017
          %1102 = vmatprep.subr.mxu0 %v1022
          %1103 = vmatpush1.msra.mxu0 %v1021
          %1104 = vmatprep.subr.mxu0 %v1026
          %1105 = vmatpush1.msra.mxu0 %v1025
          %1106 = vmatprep.subr.mxu0 0.0
          %1107 = vmatpush1.msra.mxu0 0.0
          %1108 = vmatprep.subr.mxu0 0.0
          %1109 = vmatpush1.msra.mxu0 0.0
          %1110 = vmatprep.subr.mxu0 0.0
          %1111 = vmatpush1.msra.mxu0 0.0
          %1112 = vmatprep.subr.mxu0 0.0
          %1113 = vmatpush1.msra.mxu0 0.0
          %1114 = vmatprep.subr.mxu0 0.0
          %1115 = vmatpush1.msra.mxu0 0.0
          %1116 = vmatprep.subr.mxu0 0.0
          %1117 = vmatpush1.msra.mxu0 0.0
          %1118 = vmatprep.subr.mxu0 0.0
          %1119 = vmatpush1.msra.mxu0 0.0
          %1120 = vmatprep.subr.mxu0 0.0
          %1121 = vmatpush1.msra.mxu0 0.0
          %1122 = vmatprep.subr.mxu0 0.0
          %1123 = vmatpush1.msra.mxu0 0.0
          %1124 = vmatprep.subr.mxu0 0.0
          %1125 = vmatpush1.msra.mxu0 0.0
          %1126 = vmatprep.subr.mxu0 0.0
          %1127 = vmatpush1.msra.mxu0 0.0
          %1128 = vmatprep.subr.mxu0 0.0
          %1129 = vmatpush1.msra.mxu0 0.0
          %1130 = vmatprep.subr.mxu0 0.0
          %1131 = vmatpush1.msra.mxu0 0.0
          %1132 = vmatprep.subr.mxu0 0.0
          %1133 = vmatpush1.msra.mxu0 0.0
          %1134 = vmatprep.subr.mxu0 0.0
          %1135 = vmatpush1.msra.mxu0 0.0
          %1136 = vmatprep.subr.mxu0 0.0
          %1137 = vmatpush1.msra.mxu0 0.0
          %1138 = vmatprep.subr.mxu0 0.0
          %1139 = vmatpush1.msra.mxu0 0.0
          %1140 = vmatprep.subr.mxu0 0.0
          %1141 = vmatpush1.msra.mxu0 0.0
          %1142 = vmatprep.subr.mxu0 0.0
          %1143 = vmatpush1.msra.mxu0 0.0
          %1144 = vmatprep.subr.mxu0 0.0
          %1145 = vmatpush1.msra.mxu0 0.0
          %1146 = vmatprep.subr.mxu0 0.0
          %1147 = vmatpush1.msra.mxu0 0.0
          %1148 = vmatprep.subr.mxu0 0.0
          %1149 = vmatpush1.msra.mxu0 0.0
          %1150 = vmatprep.subr.mxu0 0.0
          %1151 = vmatpush1.msra.mxu0 0.0
          %1152 = vmatprep.subr.mxu0 0.0
          %1153 = vmatpush1.msra.mxu0 0.0
          %1154 = vmatprep.subr.mxu0 0.0
          %1155 = vmatpush1.msra.mxu0 0.0
          %1156 = vmatprep.subr.mxu0 0.0
          %1157 = vmatpush1.msra.mxu0 0.0
          %1158 = vmatprep.subr.mxu0 0.0
          %1159 = vmatpush1.msra.mxu0 0.0
          %1160 = vmatprep.subr.mxu0 0.0
          %1161 = vmatpush1.msra.mxu0 0.0
          %1162 = vmatprep.mubr.f32.mxu0 0.0
          %1163 = vmatmul.mubr.f32.gmra.mrb[0].mxu0 %v574
          %v1164 = vpop.f32.mrb[0].mxu0
          %v1165 = vadd.f32 %v571, %v1164
          %v1166 = vpop.f32.mrb[0].mxu0
          %v1167 = vadd.f32 %v571, %v1166
          %1168 = vdwg.mxu0
          %v1169 = vld [vmem:[%s719] sm:$0x55]
          %v1170 = vunpack.c.l.bf16 %v1169
          %v1171 = vunpack.c.h.bf16 %v1169
          %v1172 = vmul.f32 %v1094, 0.2951549
          %v1173 = vmul.f32 %v1096, 0.2951549
          %v1174 = vmul.f32 %v1165, 0.2951549
          %v1175 = vmul.f32 %v1167, 0.2951549
          %v1176 = vmul.f32 %v320, 0.9056578
          %v1178 = vlaneseq
          %v1179 = vshrl.u32 %v1178, 7
          %v1180 = vsub.s32 0, %v1179
          %v1181 = vrot.slane %v1176, %v1180
          %v1182 = vlaneseq
          %v1183 = vshrl.u32 %v1182, 7
          %v1184 = vsub.s32 2, %v1183
          %v1185 = vrot.slane %v1176, %v1184
          %v1186 = vlaneseq
          %v1187 = vshrl.u32 %v1186, 7
          %v1188 = vsub.s32 4, %v1187
          %v1189 = vrot.slane %v1176, %v1188
          %v1190 = vlaneseq
          %v1191 = vshrl.u32 %v1190, 7
          %v1192 = vsub.s32 6, %v1191
          %v1193 = vrot.slane %v1176, %v1192
          %v1198 = vadd.f32 %v1172, %v1181
          %v1199 = vadd.f32 %v1173, %v1185
          %v1200 = vadd.f32 %v1174, %v1189
          %v1201 = vadd.f32 %v1175, %v1193
          %v1202 = vmul.f32 %v1170, 0.084751256
          %v1203 = vmul.f32 %v1171, 0.084751256
          %v1206 = vlaneseq
          %v1207 = vshrl.u32 %v1206, 7
          %v1208 = vsub.s32 1, %v1207
          %v1209 = vrot.slane %v1202, %v1208
          %v1210 = vlaneseq
          %v1211 = vshrl.u32 %v1210, 7
          %v1212 = vsub.s32 5, %v1211
          %v1213 = vrot.slane %v1202, %v1212
          %v1214 = vlaneseq
          %v1215 = vshrl.u32 %v1214, 7
          %v1216 = vsub.s32 1, %v1215
          %v1217 = vrot.slane %v1203, %v1216
          %v1218 = vlaneseq
          %v1219 = vshrl.u32 %v1218, 7
          %v1220 = vsub.s32 5, %v1219
          %v1221 = vrot.slane %v1203, %v1220
          %v1226 = vadd.f32 %v1198, %v1209
          %v1227 = vadd.f32 %v1199, %v1213
          %v1228 = vadd.f32 %v1200, %v1217
          %v1229 = vadd.f32 %v1201, %v1221
          %v1234 = vcombine.low %v1226, %v1227
          %v1235 = vcombine.low %v1228, %v1229
          %v1237 = vunpack.c.l.s4 1966171168
          %v1238 = vunpack.c.0.s8 %v1237
          %v1239 = vlaneseq
          %v1240 = vshrl.u32 %v1239, 7
          %v1241 = vsub.s32 %v1238, %v1240
          %v1242 = vrot.slane %v1234, %v1241
          %v1244 = vunpack.c.l.s4 1966171168
          %v1245 = vunpack.c.0.s8 %v1244
          %v1246 = vlaneseq
          %v1247 = vshrl.u32 %v1246, 7
          %v1248 = vsub.s32 %v1245, %v1247
          %v1249 = vrot.slane %v1235, %v1248
          %v1250 = vcombine.low %v1242, %v1249
          %v1252 = vunpack.c.l.s4 1966171168
          %v1253 = vunpack.c.0.s8 %v1252
          %v1254 = vlaneseq
          %v1255 = vshrl.u32 %v1254, 7
          %v1256 = vsub.s32 %v1253, %v1255
          %v1257 = vrot.slane %v1250, %v1256
          %1259 = vst.msk [vmem:[%s345] ss:$8 sm:$0xf] %vm301, %v1257
          %1260 = vst.msk [vmem:[%s345] ss:$8 sm:$0x0] %vm301, %v1257
          %s1261 = scalar_lea.vmem %s3, 64
          %v1262 = vld [vmem:[%s1261] sm:$0xff]
          %v1263 = vld [vmem:[%s1261 + $0x8] sm:$0xff]
          %v1264 = vld [vmem:[%s1261 + $0x10] sm:$0xff]
          %v1265 = vld [vmem:[%s1261 + $0x18] sm:$0xff]
          %v1266 = vld [vmem:[#allocation2] sm:$0xff]
          %v1267 = vld [vmem:[#allocation2 + $0x8] sm:$0xff]
          %v1268 = vld [vmem:[#allocation2 + $0x10] sm:$0xff]
          %v1269 = vld [vmem:[#allocation2 + $0x18] sm:$0xff]
          %v1271 = vsel %vm356, %v1262, 0
          %v1274 = vsel %vm356, %v1263, 0
          %v1277 = vsel %vm356, %v1264, 0
          %v1280 = vsel %vm356, %v1265, 0
          %1282 = vmatprep.subr.mxu0 %v1267
          %1283 = vmatpush1.msra.mxu0 %v1266
          %1284 = vmatprep.subr.mxu0 0.0
          %1285 = vmatpush1.msra.mxu0 0.0
          %1286 = vmatprep.subr.mxu0 0.0
          %1287 = vmatpush1.msra.mxu0 0.0
          %1288 = vmatprep.subr.mxu0 0.0
          %1289 = vmatpush1.msra.mxu0 0.0
          %1290 = vmatprep.subr.mxu0 0.0
          %1291 = vmatpush1.msra.mxu0 0.0
          %1292 = vmatprep.subr.mxu0 0.0
          %1293 = vmatpush1.msra.mxu0 0.0
          %1294 = vmatprep.subr.mxu0 0.0
          %1295 = vmatpush1.msra.mxu0 0.0
          %1296 = vmatprep.subr.mxu0 0.0
          %1297 = vmatpush1.msra.mxu0 0.0
          %1298 = vmatprep.subr.mxu0 0.0
          %1299 = vmatpush1.msra.mxu0 0.0
          %1300 = vmatprep.subr.mxu0 0.0
          %1301 = vmatpush1.msra.mxu0 0.0
          %1302 = vmatprep.subr.mxu0 0.0
          %1303 = vmatpush1.msra.mxu0 0.0
          %1304 = vmatprep.subr.mxu0 0.0
          %1305 = vmatpush1.msra.mxu0 0.0
          %1306 = vmatprep.subr.mxu0 0.0
          %1307 = vmatpush1.msra.mxu0 0.0
          %1308 = vmatprep.subr.mxu0 0.0
          %1309 = vmatpush1.msra.mxu0 0.0
          %1310 = vmatprep.subr.mxu0 0.0
          %1311 = vmatpush1.msra.mxu0 0.0
          %1312 = vmatprep.subr.mxu0 0.0
          %1313 = vmatpush1.msra.mxu0 0.0
          %1314 = vmatprep.subr.mxu0 0.0
          %1315 = vmatpush1.msra.mxu0 0.0
          %1316 = vmatprep.subr.mxu0 0.0
          %1317 = vmatpush1.msra.mxu0 0.0
          %1318 = vmatprep.subr.mxu0 0.0
          %1319 = vmatpush1.msra.mxu0 0.0
          %1320 = vmatprep.subr.mxu0 0.0
          %1321 = vmatpush1.msra.mxu0 0.0
          %1322 = vmatprep.subr.mxu0 0.0
          %1323 = vmatpush1.msra.mxu0 0.0
          %1324 = vmatprep.subr.mxu0 0.0
          %1325 = vmatpush1.msra.mxu0 0.0
          %1326 = vmatprep.subr.mxu0 0.0
          %1327 = vmatpush1.msra.mxu0 0.0
          %1328 = vmatprep.subr.mxu0 0.0
          %1329 = vmatpush1.msra.mxu0 0.0
          %1330 = vmatprep.subr.mxu0 0.0
          %1331 = vmatpush1.msra.mxu0 0.0
          %1332 = vmatprep.subr.mxu0 0.0
          %1333 = vmatpush1.msra.mxu0 0.0
          %1334 = vmatprep.subr.mxu0 0.0
          %1335 = vmatpush1.msra.mxu0 0.0
          %1336 = vmatprep.subr.mxu0 0.0
          %1337 = vmatpush1.msra.mxu0 0.0
          %1338 = vmatprep.subr.mxu0 0.0
          %1339 = vmatpush1.msra.mxu0 0.0
          %1340 = vmatprep.subr.mxu0 0.0
          %1341 = vmatpush1.msra.mxu0 0.0
          %1342 = vmatprep.subr.mxu0 0.0
          %1343 = vmatpush1.msra.mxu0 0.0
          %1344 = vmatprep.subr.mxu0 0.0
          %1345 = vmatpush1.msra.mxu0 0.0
          %1346 = vmatprep.mubr.f32.mxu0 0.0
          %1347 = vmatmul.mubr.f32.gmra.mrb[0].mxu0 %v1271
          %v1348 = vpop.f32.mrb[0].mxu0
          %v1349 = vadd.f32 0.0, %v1348
          %v1350 = vpop.f32.mrb[0].mxu0
          %v1351 = vadd.f32 0.0, %v1350
          %1352 = vmatprep.mubr.f32.mxu0 0.0
          %1353 = vmatmul.mubr.f32.gmra.mrb[0].mxu0 %v1274
          %v1354 = vpop.f32.mrb[0].mxu0
          %v1355 = vadd.f32 0.0, %v1354
          %v1356 = vpop.f32.mrb[0].mxu0
          %v1357 = vadd.f32 0.0, %v1356
          %1358 = vmatprep.mubr.f32.mxu0 0.0
          %1359 = vmatmul.mubr.f32.gmra.mrb[0].mxu0 %v1277
          %v1360 = vpop.f32.mrb[0].mxu0
          %v1361 = vadd.f32 0.0, %v1360
          %v1362 = vpop.f32.mrb[0].mxu0
          %v1363 = vadd.f32 0.0, %v1362
          %1364 = vmatprep.mubr.f32.mxu0 0.0
          %1365 = vmatmul.mubr.f32.gmra.mrb[0].mxu0 %v1280
          %v1366 = vpop.f32.mrb[0].mxu0
          %v1367 = vadd.f32 0.0, %v1366
          %v1368 = vpop.f32.mrb[0].mxu0
          %v1369 = vadd.f32 0.0, %v1368
          %1370 = vdwg.mxu0
          %1371 = vmatprep.subr.mxu0 %v1269
          %1372 = vmatpush1.msra.mxu0 %v1268
          %1373 = vmatprep.subr.mxu0 0.0
          %1374 = vmatpush1.msra.mxu0 0.0
          %1375 = vmatprep.subr.mxu0 0.0
          %1376 = vmatpush1.msra.mxu0 0.0
          %1377 = vmatprep.subr.mxu0 0.0
          %1378 = vmatpush1.msra.mxu0 0.0
          %1379 = vmatprep.subr.mxu0 0.0
          %1380 = vmatpush1.msra.mxu0 0.0
          %1381 = vmatprep.subr.mxu0 0.0
          %1382 = vmatpush1.msra.mxu0 0.0
          %1383 = vmatprep.subr.mxu0 0.0
          %1384 = vmatpush1.msra.mxu0 0.0
          %1385 = vmatprep.subr.mxu0 0.0
          %1386 = vmatpush1.msra.mxu0 0.0
          %1387 = vmatprep.subr.mxu0 0.0
          %1388 = vmatpush1.msra.mxu0 0.0
          %1389 = vmatprep.subr.mxu0 0.0
          %1390 = vmatpush1.msra.mxu0 0.0
          %1391 = vmatprep.subr.mxu0 0.0
          %1392 = vmatpush1.msra.mxu0 0.0
          %1393 = vmatprep.subr.mxu0 0.0
          %1394 = vmatpush1.msra.mxu0 0.0
          %1395 = vmatprep.subr.mxu0 0.0
          %1396 = vmatpush1.msra.mxu0 0.0
          %1397 = vmatprep.subr.mxu0 0.0
          %1398 = vmatpush1.msra.mxu0 0.0
          %1399 = vmatprep.subr.mxu0 0.0
          %1400 = vmatpush1.msra.mxu0 0.0
          %1401 = vmatprep.subr.mxu0 0.0
          %1402 = vmatpush1.msra.mxu0 0.0
          %1403 = vmatprep.subr.mxu0 0.0
          %1404 = vmatpush1.msra.mxu0 0.0
          %1405 = vmatprep.subr.mxu0 0.0
          %1406 = vmatpush1.msra.mxu0 0.0
          %1407 = vmatprep.subr.mxu0 0.0
          %1408 = vmatpush1.msra.mxu0 0.0
          %1409 = vmatprep.subr.mxu0 0.0
          %1410 = vmatpush1.msra.mxu0 0.0
          %1411 = vmatprep.subr.mxu0 0.0
          %1412 = vmatpush1.msra.mxu0 0.0
          %1413 = vmatprep.subr.mxu0 0.0
          %1414 = vmatpush1.msra.mxu0 0.0
          %1415 = vmatprep.subr.mxu0 0.0
          %1416 = vmatpush1.msra.mxu0 0.0
          %1417 = vmatprep.subr.mxu0 0.0
          %1418 = vmatpush1.msra.mxu0 0.0
          %1419 = vmatprep.subr.mxu0 0.0
          %1420 = vmatpush1.msra.mxu0 0.0
          %1421 = vmatprep.subr.mxu0 0.0
          %1422 = vmatpush1.msra.mxu0 0.0
          %1423 = vmatprep.subr.mxu0 0.0
          %1424 = vmatpush1.msra.mxu0 0.0
          %1425 = vmatprep.subr.mxu0 0.0
          %1426 = vmatpush1.msra.mxu0 0.0
          %1427 = vmatprep.subr.mxu0 0.0
          %1428 = vmatpush1.msra.mxu0 0.0
          %1429 = vmatprep.subr.mxu0 0.0
          %1430 = vmatpush1.msra.mxu0 0.0
          %1431 = vmatprep.subr.mxu0 0.0
          %1432 = vmatpush1.msra.mxu0 0.0
          %1433 = vmatprep.subr.mxu0 0.0
          %1434 = vmatpush1.msra.mxu0 0.0
          %1435 = vmatprep.mubr.f32.mxu0 0.0
          %1436 = vmatmul.mubr.f32.gmra.mrb[0].mxu0 %v1271
          %v1437 = vpop.f32.mrb[0].mxu0
          %v1438 = vadd.f32 0.0, %v1437
          %v1439 = vpop.f32.mrb[0].mxu0
          %v1440 = vadd.f32 0.0, %v1439
          %1441 = vmatprep.mubr.f32.mxu0 0.0
          %1442 = vmatmul.mubr.f32.gmra.mrb[0].mxu0 %v1274
          %v1443 = vpop.f32.mrb[0].mxu0
          %v1444 = vadd.f32 0.0, %v1443
          %v1445 = vpop.f32.mrb[0].mxu0
          %v1446 = vadd.f32 0.0, %v1445
          %1447 = vmatprep.mubr.f32.mxu0 0.0
          %1448 = vmatmul.mubr.f32.gmra.mrb[0].mxu0 %v1277
          %v1449 = vpop.f32.mrb[0].mxu0
          %v1450 = vadd.f32 0.0, %v1449
          %v1451 = vpop.f32.mrb[0].mxu0
          %v1452 = vadd.f32 0.0, %v1451
          %1453 = vmatprep.mubr.f32.mxu0 0.0
          %1454 = vmatmul.mubr.f32.gmra.mrb[0].mxu0 %v1280
          %v1455 = vpop.f32.mrb[0].mxu0
          %v1456 = vadd.f32 0.0, %v1455
          %v1457 = vpop.f32.mrb[0].mxu0
          %v1458 = vadd.f32 0.0, %v1457
          %1459 = vdwg.mxu0
          %v1460 = vmax.f32 %v1349, 0.0
          %v1461 = vmax.f32 %v1351, 0.0
          %v1462 = vmax.f32 %v1438, 0.0
          %v1463 = vmax.f32 %v1440, 0.0
          %v1464 = vmax.f32 %v1355, 0.0
          %v1465 = vmax.f32 %v1357, 0.0
          %v1466 = vmax.f32 %v1444, 0.0
          %v1467 = vmax.f32 %v1446, 0.0
          %v1468 = vmax.f32 %v1361, 0.0
          %v1469 = vmax.f32 %v1363, 0.0
          %v1470 = vmax.f32 %v1450, 0.0
          %v1471 = vmax.f32 %v1452, 0.0
          %v1472 = vmax.f32 %v1367, 0.0
          %v1473 = vmax.f32 %v1369, 0.0
          %v1474 = vmax.f32 %v1456, 0.0
          %v1475 = vmax.f32 %v1458, 0.0
          %1476 = vmatprep.subr.mxu0 %v1461
          %1477 = vmatpush1.msra.mxu0 %v1460
          %1478 = vmatprep.subr.mxu0 %v1465
          %1479 = vmatpush1.msra.mxu0 %v1464
          %1480 = vmatprep.subr.mxu0 %v1469
          %1481 = vmatpush1.msra.mxu0 %v1468
          %1482 = vmatprep.subr.mxu0 %v1473
          %1483 = vmatpush1.msra.mxu0 %v1472
          %1484 = vmatprep.subr.mxu0 0.0
          %1485 = vmatpush1.msra.mxu0 0.0
          %1486 = vmatprep.subr.mxu0 0.0
          %1487 = vmatpush1.msra.mxu0 0.0
          %1488 = vmatprep.subr.mxu0 0.0
          %1489 = vmatpush1.msra.mxu0 0.0
          %1490 = vmatprep.subr.mxu0 0.0
          %1491 = vmatpush1.msra.mxu0 0.0
          %1492 = vmatprep.subr.mxu0 0.0
          %1493 = vmatpush1.msra.mxu0 0.0
          %1494 = vmatprep.subr.mxu0 0.0
          %1495 = vmatpush1.msra.mxu0 0.0
          %1496 = vmatprep.subr.mxu0 0.0
          %1497 = vmatpush1.msra.mxu0 0.0
          %1498 = vmatprep.subr.mxu0 0.0
          %1499 = vmatpush1.msra.mxu0 0.0
          %1500 = vmatprep.subr.mxu0 0.0
          %1501 = vmatpush1.msra.mxu0 0.0
          %1502 = vmatprep.subr.mxu0 0.0
          %1503 = vmatpush1.msra.mxu0 0.0
          %1504 = vmatprep.subr.mxu0 0.0
          %1505 = vmatpush1.msra.mxu0 0.0
          %1506 = vmatprep.subr.mxu0 0.0
          %1507 = vmatpush1.msra.mxu0 0.0
          %1508 = vmatprep.subr.mxu0 0.0
          %1509 = vmatpush1.msra.mxu0 0.0
          %1510 = vmatprep.subr.mxu0 0.0
          %1511 = vmatpush1.msra.mxu0 0.0
          %1512 = vmatprep.subr.mxu0 0.0
          %1513 = vmatpush1.msra.mxu0 0.0
          %1514 = vmatprep.subr.mxu0 0.0
          %1515 = vmatpush1.msra.mxu0 0.0
          %1516 = vmatprep.subr.mxu0 0.0
          %1517 = vmatpush1.msra.mxu0 0.0
          %1518 = vmatprep.subr.mxu0 0.0
          %1519 = vmatpush1.msra.mxu0 0.0
          %1520 = vmatprep.subr.mxu0 0.0
          %1521 = vmatpush1.msra.mxu0 0.0
          %1522 = vmatprep.subr.mxu0 0.0
          %1523 = vmatpush1.msra.mxu0 0.0
          %1524 = vmatprep.subr.mxu0 0.0
          %1525 = vmatpush1.msra.mxu0 0.0
          %1526 = vmatprep.subr.mxu0 0.0
          %1527 = vmatpush1.msra.mxu0 0.0
          %1528 = vmatprep.subr.mxu0 0.0
          %1529 = vmatpush1.msra.mxu0 0.0
          %1530 = vmatprep.subr.mxu0 0.0
          %1531 = vmatpush1.msra.mxu0 0.0
          %1532 = vmatprep.subr.mxu0 0.0
          %1533 = vmatpush1.msra.mxu0 0.0
          %1534 = vmatprep.subr.mxu0 0.0
          %1535 = vmatpush1.msra.mxu0 0.0
          %1536 = vmatprep.subr.mxu0 0.0
          %1537 = vmatpush1.msra.mxu0 0.0
          %1538 = vmatprep.subr.mxu0 0.0
          %1539 = vmatpush1.msra.mxu0 0.0
          %1540 = vmatprep.mubr.f32.mxu0 0.0
          %1541 = vmatmul.mubr.f32.gmra.mrb[0].mxu0 %v574
          %v1542 = vpop.f32.mrb[0].mxu0
          %v1543 = vadd.f32 %v571, %v1542
          %v1544 = vpop.f32.mrb[0].mxu0
          %v1545 = vadd.f32 %v571, %v1544
          %1546 = vdwg.mxu0
          %1547 = vmatprep.subr.mxu0 %v1463
          %1548 = vmatpush1.msra.mxu0 %v1462
          %1549 = vmatprep.subr.mxu0 %v1467
          %1550 = vmatpush1.msra.mxu0 %v1466
          %1551 = vmatprep.subr.mxu0 %v1471
          %1552 = vmatpush1.msra.mxu0 %v1470
          %1553 = vmatprep.subr.mxu0 %v1475
          %1554 = vmatpush1.msra.mxu0 %v1474
          %1555 = vmatprep.subr.mxu0 0.0
          %1556 = vmatpush1.msra.mxu0 0.0
          %1557 = vmatprep.subr.mxu0 0.0
          %1558 = vmatpush1.msra.mxu0 0.0
          %1559 = vmatprep.subr.mxu0 0.0
          %1560 = vmatpush1.msra.mxu0 0.0
          %1561 = vmatprep.subr.mxu0 0.0
          %1562 = vmatpush1.msra.mxu0 0.0
          %1563 = vmatprep.subr.mxu0 0.0
          %1564 = vmatpush1.msra.mxu0 0.0
          %1565 = vmatprep.subr.mxu0 0.0
          %1566 = vmatpush1.msra.mxu0 0.0
          %1567 = vmatprep.subr.mxu0 0.0
          %1568 = vmatpush1.msra.mxu0 0.0
          %1569 = vmatprep.subr.mxu0 0.0
          %1570 = vmatpush1.msra.mxu0 0.0
          %1571 = vmatprep.subr.mxu0 0.0
          %1572 = vmatpush1.msra.mxu0 0.0
          %1573 = vmatprep.subr.mxu0 0.0
          %1574 = vmatpush1.msra.mxu0 0.0
          %1575 = vmatprep.subr.mxu0 0.0
          %1576 = vmatpush1.msra.mxu0 0.0
          %1577 = vmatprep.subr.mxu0 0.0
          %1578 = vmatpush1.msra.mxu0 0.0
          %1579 = vmatprep.subr.mxu0 0.0
          %1580 = vmatpush1.msra.mxu0 0.0
          %1581 = vmatprep.subr.mxu0 0.0
          %1582 = vmatpush1.msra.mxu0 0.0
          %1583 = vmatprep.subr.mxu0 0.0
          %1584 = vmatpush1.msra.mxu0 0.0
          %1585 = vmatprep.subr.mxu0 0.0
          %1586 = vmatpush1.msra.mxu0 0.0
          %1587 = vmatprep.subr.mxu0 0.0
          %1588 = vmatpush1.msra.mxu0 0.0
          %1589 = vmatprep.subr.mxu0 0.0
          %1590 = vmatpush1.msra.mxu0 0.0
          %1591 = vmatprep.subr.mxu0 0.0
          %1592 = vmatpush1.msra.mxu0 0.0
          %1593 = vmatprep.subr.mxu0 0.0
          %1594 = vmatpush1.msra.mxu0 0.0
          %1595 = vmatprep.subr.mxu0 0.0
          %1596 = vmatpush1.msra.mxu0 0.0
          %1597 = vmatprep.subr.mxu0 0.0
          %1598 = vmatpush1.msra.mxu0 0.0
          %1599 = vmatprep.subr.mxu0 0.0
          %1600 = vmatpush1.msra.mxu0 0.0
          %1601 = vmatprep.subr.mxu0 0.0
          %1602 = vmatpush1.msra.mxu0 0.0
          %1603 = vmatprep.subr.mxu0 0.0
          %1604 = vmatpush1.msra.mxu0 0.0
          %1605 = vmatprep.subr.mxu0 0.0
          %1606 = vmatpush1.msra.mxu0 0.0
          %1607 = vmatprep.subr.mxu0 0.0
          %1608 = vmatpush1.msra.mxu0 0.0
          %1609 = vmatprep.subr.mxu0 0.0
          %1610 = vmatpush1.msra.mxu0 0.0
          %1611 = vmatprep.mubr.f32.mxu0 0.0
          %1612 = vmatmul.mubr.f32.gmra.mrb[0].mxu0 %v574
          %v1613 = vpop.f32.mrb[0].mxu0
          %v1614 = vadd.f32 %v571, %v1613
          %v1615 = vpop.f32.mrb[0].mxu0
          %v1616 = vadd.f32 %v571, %v1615
          %1617 = vdwg.mxu0
          %v1618 = vld [vmem:[%s719] sm:$0xaa]
          %v1619 = vunpack.c.l.bf16 %v1618
          %v1620 = vunpack.c.h.bf16 %v1618
          %v1621 = vmul.f32 %v1543, 0.52420145
          %v1622 = vmul.f32 %v1545, 0.52420145
          %v1623 = vmul.f32 %v1614, 0.52420145
          %v1624 = vmul.f32 %v1616, 0.52420145
          %v1625 = vmul.f32 %v320, 0.64993566
          %v1627 = vlaneseq
          %v1628 = vshrl.u32 %v1627, 7
          %v1629 = vsub.s32 0, %v1628
          %v1630 = vrot.slane %v1625, %v1629
          %v1631 = vlaneseq
          %v1632 = vshrl.u32 %v1631, 7
          %v1633 = vsub.s32 2, %v1632
          %v1634 = vrot.slane %v1625, %v1633
          %v1635 = vlaneseq
          %v1636 = vshrl.u32 %v1635, 7
          %v1637 = vsub.s32 4, %v1636
          %v1638 = vrot.slane %v1625, %v1637
          %v1639 = vlaneseq
          %v1640 = vshrl.u32 %v1639, 7
          %v1641 = vsub.s32 6, %v1640
          %v1642 = vrot.slane %v1625, %v1641
          %v1647 = vadd.f32 %v1621, %v1630
          %v1648 = vadd.f32 %v1622, %v1634
          %v1649 = vadd.f32 %v1623, %v1638
          %v1650 = vadd.f32 %v1624, %v1642
          %v1651 = vmul.f32 %v1619, 0.054814503
          %v1652 = vmul.f32 %v1620, 0.054814503
          %v1655 = vlaneseq
          %v1656 = vshrl.u32 %v1655, 7
          %v1657 = vsub.s32 2, %v1656
          %v1658 = vrot.slane %v1651, %v1657
          %v1659 = vlaneseq
          %v1660 = vshrl.u32 %v1659, 7
          %v1661 = vsub.s32 6, %v1660
          %v1662 = vrot.slane %v1651, %v1661
          %v1663 = vlaneseq
          %v1664 = vshrl.u32 %v1663, 7
          %v1665 = vsub.s32 2, %v1664
          %v1666 = vrot.slane %v1652, %v1665
          %v1667 = vlaneseq
          %v1668 = vshrl.u32 %v1667, 7
          %v1669 = vsub.s32 6, %v1668
          %v1670 = vrot.slane %v1652, %v1669
          %v1675 = vadd.f32 %v1647, %v1658
          %v1676 = vadd.f32 %v1648, %v1662
          %v1677 = vadd.f32 %v1649, %v1666
          %v1678 = vadd.f32 %v1650, %v1670
          %v1683 = vcombine.low %v1675, %v1676
          %v1684 = vcombine.low %v1677, %v1678
          %v1686 = vunpack.c.l.s4 1966171168
          %v1687 = vunpack.c.0.s8 %v1686
          %v1688 = vlaneseq
          %v1689 = vshrl.u32 %v1688, 7
          %v1690 = vsub.s32 %v1687, %v1689
          %v1691 = vrot.slane %v1683, %v1690
          %v1693 = vunpack.c.l.s4 1966171168
          %v1694 = vunpack.c.0.s8 %v1693
          %v1695 = vlaneseq
          %v1696 = vshrl.u32 %v1695, 7
          %v1697 = vsub.s32 %v1694, %v1696
          %v1698 = vrot.slane %v1684, %v1697
          %v1699 = vcombine.low %v1691, %v1698
          %v1701 = vunpack.c.l.s4 1966171168
          %v1702 = vunpack.c.0.s8 %v1701
          %v1703 = vlaneseq
          %v1704 = vshrl.u32 %v1703, 7
          %v1705 = vsub.s32 %v1702, %v1704
          %v1706 = vrot.slane %v1699, %v1705
          %1708 = vst.msk [vmem:[%s345] ss:$8 sm:$0xf] %vm301, %v1706
          %1709 = vst.msk [vmem:[%s345] ss:$8 sm:$0x0] %vm301, %v1706
          %s1710 = scalar_lea.vmem %s3, 96
          %v1711 = vld [vmem:[%s1710] sm:$0xff]
          %v1712 = vld [vmem:[%s1710 + $0x8] sm:$0xff]
          %v1713 = vld [vmem:[%s1710 + $0x10] sm:$0xff]
          %v1714 = vld [vmem:[%s1710 + $0x18] sm:$0xff]
          %v1715 = vld [vmem:[#allocation2] sm:$0xff]
          %v1716 = vld [vmem:[#allocation2 + $0x8] sm:$0xff]
          %v1717 = vld [vmem:[#allocation2 + $0x10] sm:$0xff]
          %v1718 = vld [vmem:[#allocation2 + $0x18] sm:$0xff]
          %v1720 = vsel %vm356, %v1711, 0
          %v1723 = vsel %vm356, %v1712, 0
          %v1726 = vsel %vm356, %v1713, 0
          %v1729 = vsel %vm356, %v1714, 0
          %1731 = vmatprep.subr.mxu0 %v1716
          %1732 = vmatpush1.msra.mxu0 %v1715
          %1733 = vmatprep.subr.mxu0 0.0
          %1734 = vmatpush1.msra.mxu0 0.0
          %1735 = vmatprep.subr.mxu0 0.0
          %1736 = vmatpush1.msra.mxu0 0.0
          %1737 = vmatprep.subr.mxu0 0.0
          %1738 = vmatpush1.msra.mxu0 0.0
          %1739 = vmatprep.subr.mxu0 0.0
          %1740 = vmatpush1.msra.mxu0 0.0
          %1741 = vmatprep.subr.mxu0 0.0
          %1742 = vmatpush1.msra.mxu0 0.0
          %1743 = vmatprep.subr.mxu0 0.0
          %1744 = vmatpush1.msra.mxu0 0.0
          %1745 = vmatprep.subr.mxu0 0.0
          %1746 = vmatpush1.msra.mxu0 0.0
          %1747 = vmatprep.subr.mxu0 0.0
          %1748 = vmatpush1.msra.mxu0 0.0
          %1749 = vmatprep.subr.mxu0 0.0
          %1750 = vmatpush1.msra.mxu0 0.0
          %1751 = vmatprep.subr.mxu0 0.0
          %1752 = vmatpush1.msra.mxu0 0.0
          %1753 = vmatprep.subr.mxu0 0.0
          %1754 = vmatpush1.msra.mxu0 0.0
          %1755 = vmatprep.subr.mxu0 0.0
          %1756 = vmatpush1.msra.mxu0 0.0
          %1757 = vmatprep.subr.mxu0 0.0
          %1758 = vmatpush1.msra.mxu0 0.0
          %1759 = vmatprep.subr.mxu0 0.0
          %1760 = vmatpush1.msra.mxu0 0.0
          %1761 = vmatprep.subr.mxu0 0.0
          %1762 = vmatpush1.msra.mxu0 0.0
          %1763 = vmatprep.subr.mxu0 0.0
          %1764 = vmatpush1.msra.mxu0 0.0
          %1765 = vmatprep.subr.mxu0 0.0
          %1766 = vmatpush1.msra.mxu0 0.0
          %1767 = vmatprep.subr.mxu0 0.0
          %1768 = vmatpush1.msra.mxu0 0.0
          %1769 = vmatprep.subr.mxu0 0.0
          %1770 = vmatpush1.msra.mxu0 0.0
          %1771 = vmatprep.subr.mxu0 0.0
          %1772 = vmatpush1.msra.mxu0 0.0
          %1773 = vmatprep.subr.mxu0 0.0
          %1774 = vmatpush1.msra.mxu0 0.0
          %1775 = vmatprep.subr.mxu0 0.0
          %1776 = vmatpush1.msra.mxu0 0.0
          %1777 = vmatprep.subr.mxu0 0.0
          %1778 = vmatpush1.msra.mxu0 0.0
          %1779 = vmatprep.subr.mxu0 0.0
          %1780 = vmatpush1.msra.mxu0 0.0
          %1781 = vmatprep.subr.mxu0 0.0
          %1782 = vmatpush1.msra.mxu0 0.0
          %1783 = vmatprep.subr.mxu0 0.0
          %1784 = vmatpush1.msra.mxu0 0.0
          %1785 = vmatprep.subr.mxu0 0.0
          %1786 = vmatpush1.msra.mxu0 0.0
          %1787 = vmatprep.subr.mxu0 0.0
          %1788 = vmatpush1.msra.mxu0 0.0
          %1789 = vmatprep.subr.mxu0 0.0
          %1790 = vmatpush1.msra.mxu0 0.0
          %1791 = vmatprep.subr.mxu0 0.0
          %1792 = vmatpush1.msra.mxu0 0.0
          %1793 = vmatprep.subr.mxu0 0.0
          %1794 = vmatpush1.msra.mxu0 0.0
          %1795 = vmatprep.mubr.f32.mxu0 0.0
          %1796 = vmatmul.mubr.f32.gmra.mrb[0].mxu0 %v1720
          %v1797 = vpop.f32.mrb[0].mxu0
          %v1798 = vadd.f32 0.0, %v1797
          %v1799 = vpop.f32.mrb[0].mxu0
          %v1800 = vadd.f32 0.0, %v1799
          %1801 = vmatprep.mubr.f32.mxu0 0.0
          %1802 = vmatmul.mubr.f32.gmra.mrb[0].mxu0 %v1723
          %v1803 = vpop.f32.mrb[0].mxu0
          %v1804 = vadd.f32 0.0, %v1803
          %v1805 = vpop.f32.mrb[0].mxu0
          %v1806 = vadd.f32 0.0, %v1805
          %1807 = vmatprep.mubr.f32.mxu0 0.0
          %1808 = vmatmul.mubr.f32.gmra.mrb[0].mxu0 %v1726
          %v1809 = vpop.f32.mrb[0].mxu0
          %v1810 = vadd.f32 0.0, %v1809
          %v1811 = vpop.f32.mrb[0].mxu0
          %v1812 = vadd.f32 0.0, %v1811
          %1813 = vmatprep.mubr.f32.mxu0 0.0
          %1814 = vmatmul.mubr.f32.gmra.mrb[0].mxu0 %v1729
          %v1815 = vpop.f32.mrb[0].mxu0
          %v1816 = vadd.f32 0.0, %v1815
          %v1817 = vpop.f32.mrb[0].mxu0
          %v1818 = vadd.f32 0.0, %v1817
          %1819 = vdwg.mxu0
          %1820 = vmatprep.subr.mxu0 %v1718
          %1821 = vmatpush1.msra.mxu0 %v1717
          %1822 = vmatprep.subr.mxu0 0.0
          %1823 = vmatpush1.msra.mxu0 0.0
          %1824 = vmatprep.subr.mxu0 0.0
          %1825 = vmatpush1.msra.mxu0 0.0
          %1826 = vmatprep.subr.mxu0 0.0
          %1827 = vmatpush1.msra.mxu0 0.0
          %1828 = vmatprep.subr.mxu0 0.0
          %1829 = vmatpush1.msra.mxu0 0.0
          %1830 = vmatprep.subr.mxu0 0.0
          %1831 = vmatpush1.msra.mxu0 0.0
          %1832 = vmatprep.subr.mxu0 0.0
          %1833 = vmatpush1.msra.mxu0 0.0
          %1834 = vmatprep.subr.mxu0 0.0
          %1835 = vmatpush1.msra.mxu0 0.0
          %1836 = vmatprep.subr.mxu0 0.0
          %1837 = vmatpush1.msra.mxu0 0.0
          %1838 = vmatprep.subr.mxu0 0.0
          %1839 = vmatpush1.msra.mxu0 0.0
          %1840 = vmatprep.subr.mxu0 0.0
          %1841 = vmatpush1.msra.mxu0 0.0
          %1842 = vmatprep.subr.mxu0 0.0
          %1843 = vmatpush1.msra.mxu0 0.0
          %1844 = vmatprep.subr.mxu0 0.0
          %1845 = vmatpush1.msra.mxu0 0.0
          %1846 = vmatprep.subr.mxu0 0.0
          %1847 = vmatpush1.msra.mxu0 0.0
          %1848 = vmatprep.subr.mxu0 0.0
          %1849 = vmatpush1.msra.mxu0 0.0
          %1850 = vmatprep.subr.mxu0 0.0
          %1851 = vmatpush1.msra.mxu0 0.0
          %1852 = vmatprep.subr.mxu0 0.0
          %1853 = vmatpush1.msra.mxu0 0.0
          %1854 = vmatprep.subr.mxu0 0.0
          %1855 = vmatpush1.msra.mxu0 0.0
          %1856 = vmatprep.subr.mxu0 0.0
          %1857 = vmatpush1.msra.mxu0 0.0
          %1858 = vmatprep.subr.mxu0 0.0
          %1859 = vmatpush1.msra.mxu0 0.0
          %1860 = vmatprep.subr.mxu0 0.0
          %1861 = vmatpush1.msra.mxu0 0.0
          %1862 = vmatprep.subr.mxu0 0.0
          %1863 = vmatpush1.msra.mxu0 0.0
          %1864 = vmatprep.subr.mxu0 0.0
          %1865 = vmatpush1.msra.mxu0 0.0
          %1866 = vmatprep.subr.mxu0 0.0
          %1867 = vmatpush1.msra.mxu0 0.0
          %1868 = vmatprep.subr.mxu0 0.0
          %1869 = vmatpush1.msra.mxu0 0.0
          %1870 = vmatprep.subr.mxu0 0.0
          %1871 = vmatpush1.msra.mxu0 0.0
          %1872 = vmatprep.subr.mxu0 0.0
          %1873 = vmatpush1.msra.mxu0 0.0
          %1874 = vmatprep.subr.mxu0 0.0
          %1875 = vmatpush1.msra.mxu0 0.0
          %1876 = vmatprep.subr.mxu0 0.0
          %1877 = vmatpush1.msra.mxu0 0.0
          %1878 = vmatprep.subr.mxu0 0.0
          %1879 = vmatpush1.msra.mxu0 0.0
          %1880 = vmatprep.subr.mxu0 0.0
          %1881 = vmatpush1.msra.mxu0 0.0
          %1882 = vmatprep.subr.mxu0 0.0
          %1883 = vmatpush1.msra.mxu0 0.0
          %1884 = vmatprep.mubr.f32.mxu0 0.0
          %1885 = vmatmul.mubr.f32.gmra.mrb[0].mxu0 %v1720
          %v1886 = vpop.f32.mrb[0].mxu0
          %v1887 = vadd.f32 0.0, %v1886
          %v1888 = vpop.f32.mrb[0].mxu0
          %v1889 = vadd.f32 0.0, %v1888
          %1890 = vmatprep.mubr.f32.mxu0 0.0
          %1891 = vmatmul.mubr.f32.gmra.mrb[0].mxu0 %v1723
          %v1892 = vpop.f32.mrb[0].mxu0
          %v1893 = vadd.f32 0.0, %v1892
          %v1894 = vpop.f32.mrb[0].mxu0
          %v1895 = vadd.f32 0.0, %v1894
          %1896 = vmatprep.mubr.f32.mxu0 0.0
          %1897 = vmatmul.mubr.f32.gmra.mrb[0].mxu0 %v1726
          %v1898 = vpop.f32.mrb[0].mxu0
          %v1899 = vadd.f32 0.0, %v1898
          %v1900 = vpop.f32.mrb[0].mxu0
          %v1901 = vadd.f32 0.0, %v1900
          %1902 = vmatprep.mubr.f32.mxu0 0.0
          %1903 = vmatmul.mubr.f32.gmra.mrb[0].mxu0 %v1729
          %v1904 = vpop.f32.mrb[0].mxu0
          %v1905 = vadd.f32 0.0, %v1904
          %v1906 = vpop.f32.mrb[0].mxu0
          %v1907 = vadd.f32 0.0, %v1906
          %1908 = vdwg.mxu0
          %v1909 = vmax.f32 %v1798, 0.0
          %v1910 = vmax.f32 %v1800, 0.0
          %v1911 = vmax.f32 %v1887, 0.0
          %v1912 = vmax.f32 %v1889, 0.0
          %v1913 = vmax.f32 %v1804, 0.0
          %v1914 = vmax.f32 %v1806, 0.0
          %v1915 = vmax.f32 %v1893, 0.0
          %v1916 = vmax.f32 %v1895, 0.0
          %v1917 = vmax.f32 %v1810, 0.0
          %v1918 = vmax.f32 %v1812, 0.0
          %v1919 = vmax.f32 %v1899, 0.0
          %v1920 = vmax.f32 %v1901, 0.0
          %v1921 = vmax.f32 %v1816, 0.0
          %v1922 = vmax.f32 %v1818, 0.0
          %v1923 = vmax.f32 %v1905, 0.0
          %v1924 = vmax.f32 %v1907, 0.0
          %1925 = vmatprep.subr.mxu0 %v1910
          %1926 = vmatpush1.msra.mxu0 %v1909
          %1927 = vmatprep.subr.mxu0 %v1914
          %1928 = vmatpush1.msra.mxu0 %v1913
          %1929 = vmatprep.subr.mxu0 %v1918
          %1930 = vmatpush1.msra.mxu0 %v1917
          %1931 = vmatprep.subr.mxu0 %v1922
          %1932 = vmatpush1.msra.mxu0 %v1921
          %1933 = vmatprep.subr.mxu0 0.0
          %1934 = vmatpush1.msra.mxu0 0.0
          %1935 = vmatprep.subr.mxu0 0.0
          %1936 = vmatpush1.msra.mxu0 0.0
          %1937 = vmatprep.subr.mxu0 0.0
          %1938 = vmatpush1.msra.mxu0 0.0
          %1939 = vmatprep.subr.mxu0 0.0
          %1940 = vmatpush1.msra.mxu0 0.0
          %1941 = vmatprep.subr.mxu0 0.0
          %1942 = vmatpush1.msra.mxu0 0.0
          %1943 = vmatprep.subr.mxu0 0.0
          %1944 = vmatpush1.msra.mxu0 0.0
          %1945 = vmatprep.subr.mxu0 0.0
          %1946 = vmatpush1.msra.mxu0 0.0
          %1947 = vmatprep.subr.mxu0 0.0
          %1948 = vmatpush1.msra.mxu0 0.0
          %1949 = vmatprep.subr.mxu0 0.0
          %1950 = vmatpush1.msra.mxu0 0.0
          %1951 = vmatprep.subr.mxu0 0.0
          %1952 = vmatpush1.msra.mxu0 0.0
          %1953 = vmatprep.subr.mxu0 0.0
          %1954 = vmatpush1.msra.mxu0 0.0
          %1955 = vmatprep.subr.mxu0 0.0
          %1956 = vmatpush1.msra.mxu0 0.0
          %1957 = vmatprep.subr.mxu0 0.0
          %1958 = vmatpush1.msra.mxu0 0.0
          %1959 = vmatprep.subr.mxu0 0.0
          %1960 = vmatpush1.msra.mxu0 0.0
          %1961 = vmatprep.subr.mxu0 0.0
          %1962 = vmatpush1.msra.mxu0 0.0
          %1963 = vmatprep.subr.mxu0 0.0
          %1964 = vmatpush1.msra.mxu0 0.0
          %1965 = vmatprep.subr.mxu0 0.0
          %1966 = vmatpush1.msra.mxu0 0.0
          %1967 = vmatprep.subr.mxu0 0.0
          %1968 = vmatpush1.msra.mxu0 0.0
          %1969 = vmatprep.subr.mxu0 0.0
          %1970 = vmatpush1.msra.mxu0 0.0
          %1971 = vmatprep.subr.mxu0 0.0
          %1972 = vmatpush1.msra.mxu0 0.0
          %1973 = vmatprep.subr.mxu0 0.0
          %1974 = vmatpush1.msra.mxu0 0.0
          %1975 = vmatprep.subr.mxu0 0.0
          %1976 = vmatpush1.msra.mxu0 0.0
          %1977 = vmatprep.subr.mxu0 0.0
          %1978 = vmatpush1.msra.mxu0 0.0
          %1979 = vmatprep.subr.mxu0 0.0
          %1980 = vmatpush1.msra.mxu0 0.0
          %1981 = vmatprep.subr.mxu0 0.0
          %1982 = vmatpush1.msra.mxu0 0.0
          %1983 = vmatprep.subr.mxu0 0.0
          %1984 = vmatpush1.msra.mxu0 0.0
          %1985 = vmatprep.subr.mxu0 0.0
          %1986 = vmatpush1.msra.mxu0 0.0
          %1987 = vmatprep.subr.mxu0 0.0
          %1988 = vmatpush1.msra.mxu0 0.0
          %1989 = vmatprep.mubr.f32.mxu0 0.0
          %1990 = vmatmul.mubr.f32.gmra.mrb[0].mxu0 %v574
          %v1991 = vpop.f32.mrb[0].mxu0
          %v1992 = vadd.f32 %v571, %v1991
          %v1993 = vpop.f32.mrb[0].mxu0
          %v1994 = vadd.f32 %v571, %v1993
          %1995 = vdwg.mxu0
          %1996 = vmatprep.subr.mxu0 %v1912
          %1997 = vmatpush1.msra.mxu0 %v1911
          %1998 = vmatprep.subr.mxu0 %v1916
          %1999 = vmatpush1.msra.mxu0 %v1915
          %2000 = vmatprep.subr.mxu0 %v1920
          %2001 = vmatpush1.msra.mxu0 %v1919
          %2002 = vmatprep.subr.mxu0 %v1924
          %2003 = vmatpush1.msra.mxu0 %v1923
          %2004 = vmatprep.subr.mxu0 0.0
          %2005 = vmatpush1.msra.mxu0 0.0
          %2006 = vmatprep.subr.mxu0 0.0
          %2007 = vmatpush1.msra.mxu0 0.0
          %2008 = vmatprep.subr.mxu0 0.0
          %2009 = vmatpush1.msra.mxu0 0.0
          %2010 = vmatprep.subr.mxu0 0.0
          %2011 = vmatpush1.msra.mxu0 0.0
          %2012 = vmatprep.subr.mxu0 0.0
          %2013 = vmatpush1.msra.mxu0 0.0
          %2014 = vmatprep.subr.mxu0 0.0
          %2015 = vmatpush1.msra.mxu0 0.0
          %2016 = vmatprep.subr.mxu0 0.0
          %2017 = vmatpush1.msra.mxu0 0.0
          %2018 = vmatprep.subr.mxu0 0.0
          %2019 = vmatpush1.msra.mxu0 0.0
          %2020 = vmatprep.subr.mxu0 0.0
          %2021 = vmatpush1.msra.mxu0 0.0
          %2022 = vmatprep.subr.mxu0 0.0
          %2023 = vmatpush1.msra.mxu0 0.0
          %2024 = vmatprep.subr.mxu0 0.0
          %2025 = vmatpush1.msra.mxu0 0.0
          %2026 = vmatprep.subr.mxu0 0.0
          %2027 = vmatpush1.msra.mxu0 0.0
          %2028 = vmatprep.subr.mxu0 0.0
          %2029 = vmatpush1.msra.mxu0 0.0
          %2030 = vmatprep.subr.mxu0 0.0
          %2031 = vmatpush1.msra.mxu0 0.0
          %2032 = vmatprep.subr.mxu0 0.0
          %2033 = vmatpush1.msra.mxu0 0.0
          %2034 = vmatprep.subr.mxu0 0.0
          %2035 = vmatpush1.msra.mxu0 0.0
          %2036 = vmatprep.subr.mxu0 0.0
          %2037 = vmatpush1.msra.mxu0 0.0
          %2038 = vmatprep.subr.mxu0 0.0
          %2039 = vmatpush1.msra.mxu0 0.0
          %2040 = vmatprep.subr.mxu0 0.0
          %2041 = vmatpush1.msra.mxu0 0.0
          %2042 = vmatprep.subr.mxu0 0.0
          %2043 = vmatpush1.msra.mxu0 0.0
          %2044 = vmatprep.subr.mxu0 0.0
          %2045 = vmatpush1.msra.mxu0 0.0
          %2046 = vmatprep.subr.mxu0 0.0
          %2047 = vmatpush1.msra.mxu0 0.0
          %2048 = vmatprep.subr.mxu0 0.0
          %2049 = vmatpush1.msra.mxu0 0.0
          %2050 = vmatprep.subr.mxu0 0.0
          %2051 = vmatpush1.msra.mxu0 0.0
          %2052 = vmatprep.subr.mxu0 0.0
          %2053 = vmatpush1.msra.mxu0 0.0
          %2054 = vmatprep.subr.mxu0 0.0
          %2055 = vmatpush1.msra.mxu0 0.0
          %2056 = vmatprep.subr.mxu0 0.0
          %2057 = vmatpush1.msra.mxu0 0.0
          %2058 = vmatprep.subr.mxu0 0.0
          %2059 = vmatpush1.msra.mxu0 0.0
          %2060 = vmatprep.mubr.f32.mxu0 0.0
          %2061 = vmatmul.mubr.f32.gmra.mrb[0].mxu0 %v574
          %v2062 = vpop.f32.mrb[0].mxu0
          %v2063 = vadd.f32 %v571, %v2062
          %v2064 = vpop.f32.mrb[0].mxu0
          %v2065 = vadd.f32 %v571, %v2064
          %2066 = vdwg.mxu0
          %v2067 = vld [vmem:[%s719] sm:$0xaa]
          %v2068 = vunpack.c.l.bf16 %v2067
          %v2069 = vunpack.c.h.bf16 %v2067
          %v2070 = vmul.f32 %v1992, 0.9861981
          %v2071 = vmul.f32 %v1994, 0.9861981
          %v2072 = vmul.f32 %v2063, 0.9861981
          %v2073 = vmul.f32 %v2065, 0.9861981
          %v2074 = vmul.f32 %v320, 0.016974382
          %v2076 = vlaneseq
          %v2077 = vshrl.u32 %v2076, 7
          %v2078 = vsub.s32 0, %v2077
          %v2079 = vrot.slane %v2074, %v2078
          %v2080 = vlaneseq
          %v2081 = vshrl.u32 %v2080, 7
          %v2082 = vsub.s32 2, %v2081
          %v2083 = vrot.slane %v2074, %v2082
          %v2084 = vlaneseq
          %v2085 = vshrl.u32 %v2084, 7
          %v2086 = vsub.s32 4, %v2085
          %v2087 = vrot.slane %v2074, %v2086
          %v2088 = vlaneseq
          %v2089 = vshrl.u32 %v2088, 7
          %v2090 = vsub.s32 6, %v2089
          %v2091 = vrot.slane %v2074, %v2090
          %v2096 = vadd.f32 %v2070, %v2079
          %v2097 = vadd.f32 %v2071, %v2083
          %v2098 = vadd.f32 %v2072, %v2087
          %v2099 = vadd.f32 %v2073, %v2091
          %v2100 = vmul.f32 %v2068, 0.0009999875
          %v2101 = vmul.f32 %v2069, 0.0009999875
          %v2104 = vlaneseq
          %v2105 = vshrl.u32 %v2104, 7
          %v2106 = vsub.s32 3, %v2105
          %v2107 = vrot.slane %v2100, %v2106
          %v2108 = vlaneseq
          %v2109 = vshrl.u32 %v2108, 7
          %v2110 = vsub.s32 7, %v2109
          %v2111 = vrot.slane %v2100, %v2110
          %v2112 = vlaneseq
          %v2113 = vshrl.u32 %v2112, 7
          %v2114 = vsub.s32 3, %v2113
          %v2115 = vrot.slane %v2101, %v2114
          %v2116 = vlaneseq
          %v2117 = vshrl.u32 %v2116, 7
          %v2118 = vsub.s32 7, %v2117
          %v2119 = vrot.slane %v2101, %v2118
          %v2124 = vadd.f32 %v2096, %v2107
          %v2125 = vadd.f32 %v2097, %v2111
          %v2126 = vadd.f32 %v2098, %v2115
          %v2127 = vadd.f32 %v2099, %v2119
          %v2132 = vcombine.low %v2124, %v2125
          %v2133 = vcombine.low %v2126, %v2127
          %v2135 = vunpack.c.l.s4 1966171168
          %v2136 = vunpack.c.0.s8 %v2135
          %v2137 = vlaneseq
          %v2138 = vshrl.u32 %v2137, 7
          %v2139 = vsub.s32 %v2136, %v2138
          %v2140 = vrot.slane %v2132, %v2139
          %v2142 = vunpack.c.l.s4 1966171168
          %v2143 = vunpack.c.0.s8 %v2142
          %v2144 = vlaneseq
          %v2145 = vshrl.u32 %v2144, 7
          %v2146 = vsub.s32 %v2143, %v2145
          %v2147 = vrot.slane %v2133, %v2146
          %v2148 = vcombine.low %v2140, %v2147
          %v2150 = vunpack.c.l.s4 1966171168
          %v2151 = vunpack.c.0.s8 %v2150
          %v2152 = vlaneseq
          %v2153 = vshrl.u32 %v2152, 7
          %v2154 = vsub.s32 %v2151, %v2153
          %v2155 = vrot.slane %v2148, %v2154
          %2157 = vst.msk [vmem:[%s345] ss:$8 sm:$0xf] %vm301, %v2155
          %2158 = vst.msk [vmem:[%s345] ss:$8 sm:$0x0] %vm301, %v2155
          %s2159 = scalar_lea.vmem %s3, 128
          %v2160 = vld [vmem:[%s2159] sm:$0xff]
          %v2161 = vld [vmem:[%s2159 + $0x8] sm:$0xff]
          %v2162 = vld [vmem:[%s2159 + $0x10] sm:$0xff]
          %v2163 = vld [vmem:[%s2159 + $0x18] sm:$0xff]
          %v2164 = vld [vmem:[#allocation2] sm:$0xff]
          %v2165 = vld [vmem:[#allocation2 + $0x8] sm:$0xff]
          %v2166 = vld [vmem:[#allocation2 + $0x10] sm:$0xff]
          %v2167 = vld [vmem:[#allocation2 + $0x18] sm:$0xff]
          %v2169 = vsel %vm356, %v2160, 0
          %v2172 = vsel %vm356, %v2161, 0
          %v2175 = vsel %vm356, %v2162, 0
          %v2178 = vsel %vm356, %v2163, 0
          %2180 = vmatprep.subr.mxu0 %v2165
          %2181 = vmatpush1.msra.mxu0 %v2164
          %2182 = vmatprep.subr.mxu0 0.0
          %2183 = vmatpush1.msra.mxu0 0.0
          %2184 = vmatprep.subr.mxu0 0.0
          %2185 = vmatpush1.msra.mxu0 0.0
          %2186 = vmatprep.subr.mxu0 0.0
          %2187 = vmatpush1.msra.mxu0 0.0
          %2188 = vmatprep.subr.mxu0 0.0
          %2189 = vmatpush1.msra.mxu0 0.0
          %2190 = vmatprep.subr.mxu0 0.0
          %2191 = vmatpush1.msra.mxu0 0.0
          %2192 = vmatprep.subr.mxu0 0.0
          %2193 = vmatpush1.msra.mxu0 0.0
          %2194 = vmatprep.subr.mxu0 0.0
          %2195 = vmatpush1.msra.mxu0 0.0
          %2196 = vmatprep.subr.mxu0 0.0
          %2197 = vmatpush1.msra.mxu0 0.0
          %2198 = vmatprep.subr.mxu0 0.0
          %2199 = vmatpush1.msra.mxu0 0.0
          %2200 = vmatprep.subr.mxu0 0.0
          %2201 = vmatpush1.msra.mxu0 0.0
          %2202 = vmatprep.subr.mxu0 0.0
          %2203 = vmatpush1.msra.mxu0 0.0
          %2204 = vmatprep.subr.mxu0 0.0
          %2205 = vmatpush1.msra.mxu0 0.0
          %2206 = vmatprep.subr.mxu0 0.0
          %2207 = vmatpush1.msra.mxu0 0.0
          %2208 = vmatprep.subr.mxu0 0.0
          %2209 = vmatpush1.msra.mxu0 0.0
          %2210 = vmatprep.subr.mxu0 0.0
          %2211 = vmatpush1.msra.mxu0 0.0
          %2212 = vmatprep.subr.mxu0 0.0
          %2213 = vmatpush1.msra.mxu0 0.0
          %2214 = vmatprep.subr.mxu0 0.0
          %2215 = vmatpush1.msra.mxu0 0.0
          %2216 = vmatprep.subr.mxu0 0.0
          %2217 = vmatpush1.msra.mxu0 0.0
          %2218 = vmatprep.subr.mxu0 0.0
          %2219 = vmatpush1.msra.mxu0 0.0
          %2220 = vmatprep.subr.mxu0 0.0
          %2221 = vmatpush1.msra.mxu0 0.0
          %2222 = vmatprep.subr.mxu0 0.0
          %2223 = vmatpush1.msra.mxu0 0.0
          %2224 = vmatprep.subr.mxu0 0.0
          %2225 = vmatpush1.msra.mxu0 0.0
          %2226 = vmatprep.subr.mxu0 0.0
          %2227 = vmatpush1.msra.mxu0 0.0
          %2228 = vmatprep.subr.mxu0 0.0
          %2229 = vmatpush1.msra.mxu0 0.0
          %2230 = vmatprep.subr.mxu0 0.0
          %2231 = vmatpush1.msra.mxu0 0.0
          %2232 = vmatprep.subr.mxu0 0.0
          %2233 = vmatpush1.msra.mxu0 0.0
          %2234 = vmatprep.subr.mxu0 0.0
          %2235 = vmatpush1.msra.mxu0 0.0
          %2236 = vmatprep.subr.mxu0 0.0
          %2237 = vmatpush1.msra.mxu0 0.0
          %2238 = vmatprep.subr.mxu0 0.0
          %2239 = vmatpush1.msra.mxu0 0.0
          %2240 = vmatprep.subr.mxu0 0.0
          %2241 = vmatpush1.msra.mxu0 0.0
          %2242 = vmatprep.subr.mxu0 0.0
          %2243 = vmatpush1.msra.mxu0 0.0
          %2244 = vmatprep.mubr.f32.mxu0 0.0
          %2245 = vmatmul.mubr.f32.gmra.mrb[0].mxu0 %v2169
          %v2246 = vpop.f32.mrb[0].mxu0
          %v2247 = vadd.f32 0.0, %v2246
          %v2248 = vpop.f32.mrb[0].mxu0
          %v2249 = vadd.f32 0.0, %v2248
          %2250 = vmatprep.mubr.f32.mxu0 0.0
          %2251 = vmatmul.mubr.f32.gmra.mrb[0].mxu0 %v2172
          %v2252 = vpop.f32.mrb[0].mxu0
          %v2253 = vadd.f32 0.0, %v2252
          %v2254 = vpop.f32.mrb[0].mxu0
          %v2255 = vadd.f32 0.0, %v2254
          %2256 = vmatprep.mubr.f32.mxu0 0.0
          %2257 = vmatmul.mubr.f32.gmra.mrb[0].mxu0 %v2175
          %v2258 = vpop.f32.mrb[0].mxu0
          %v2259 = vadd.f32 0.0, %v2258
          %v2260 = vpop.f32.mrb[0].mxu0
          %v2261 = vadd.f32 0.0, %v2260
          %2262 = vmatprep.mubr.f32.mxu0 0.0
          %2263 = vmatmul.mubr.f32.gmra.mrb[0].mxu0 %v2178
          %v2264 = vpop.f32.mrb[0].mxu0
          %v2265 = vadd.f32 0.0, %v2264
          %v2266 = vpop.f32.mrb[0].mxu0
          %v2267 = vadd.f32 0.0, %v2266
          %2268 = vdwg.mxu0
          %2269 = vmatprep.subr.mxu0 %v2167
          %2270 = vmatpush1.msra.mxu0 %v2166
          %2271 = vmatprep.subr.mxu0 0.0
          %2272 = vmatpush1.msra.mxu0 0.0
          %2273 = vmatprep.subr.mxu0 0.0
          %2274 = vmatpush1.msra.mxu0 0.0
          %2275 = vmatprep.subr.mxu0 0.0
          %2276 = vmatpush1.msra.mxu0 0.0
          %2277 = vmatprep.subr.mxu0 0.0
          %2278 = vmatpush1.msra.mxu0 0.0
          %2279 = vmatprep.subr.mxu0 0.0
          %2280 = vmatpush1.msra.mxu0 0.0
          %2281 = vmatprep.subr.mxu0 0.0
          %2282 = vmatpush1.msra.mxu0 0.0
          %2283 = vmatprep.subr.mxu0 0.0
          %2284 = vmatpush1.msra.mxu0 0.0
          %2285 = vmatprep.subr.mxu0 0.0
          %2286 = vmatpush1.msra.mxu0 0.0
          %2287 = vmatprep.subr.mxu0 0.0
          %2288 = vmatpush1.msra.mxu0 0.0
          %2289 = vmatprep.subr.mxu0 0.0
          %2290 = vmatpush1.msra.mxu0 0.0
          %2291 = vmatprep.subr.mxu0 0.0
          %2292 = vmatpush1.msra.mxu0 0.0
          %2293 = vmatprep.subr.mxu0 0.0
          %2294 = vmatpush1.msra.mxu0 0.0
          %2295 = vmatprep.subr.mxu0 0.0
          %2296 = vmatpush1.msra.mxu0 0.0
          %2297 = vmatprep.subr.mxu0 0.0
          %2298 = vmatpush1.msra.mxu0 0.0
          %2299 = vmatprep.subr.mxu0 0.0
          %2300 = vmatpush1.msra.mxu0 0.0
          %2301 = vmatprep.subr.mxu0 0.0
          %2302 = vmatpush1.msra.mxu0 0.0
          %2303 = vmatprep.subr.mxu0 0.0
          %2304 = vmatpush1.msra.mxu0 0.0
          %2305 = vmatprep.subr.mxu0 0.0
          %2306 = vmatpush1.msra.mxu0 0.0
          %2307 = vmatprep.subr.mxu0 0.0
          %2308 = vmatpush1.msra.mxu0 0.0
          %2309 = vmatprep.subr.mxu0 0.0
          %2310 = vmatpush1.msra.mxu0 0.0
          %2311 = vmatprep.subr.mxu0 0.0
          %2312 = vmatpush1.msra.mxu0 0.0
          %2313 = vmatprep.subr.mxu0 0.0
          %2314 = vmatpush1.msra.mxu0 0.0
          %2315 = vmatprep.subr.mxu0 0.0
          %2316 = vmatpush1.msra.mxu0 0.0
          %2317 = vmatprep.subr.mxu0 0.0
          %2318 = vmatpush1.msra.mxu0 0.0
          %2319 = vmatprep.subr.mxu0 0.0
          %2320 = vmatpush1.msra.mxu0 0.0
          %2321 = vmatprep.subr.mxu0 0.0
          %2322 = vmatpush1.msra.mxu0 0.0
          %2323 = vmatprep.subr.mxu0 0.0
          %2324 = vmatpush1.msra.mxu0 0.0
          %2325 = vmatprep.subr.mxu0 0.0
          %2326 = vmatpush1.msra.mxu0 0.0
          %2327 = vmatprep.subr.mxu0 0.0
          %2328 = vmatpush1.msra.mxu0 0.0
          %2329 = vmatprep.subr.mxu0 0.0
          %2330 = vmatpush1.msra.mxu0 0.0
          %2331 = vmatprep.subr.mxu0 0.0
          %2332 = vmatpush1.msra.mxu0 0.0
          %2333 = vmatprep.mubr.f32.mxu0 0.0
          %2334 = vmatmul.mubr.f32.gmra.mrb[0].mxu0 %v2169
          %v2335 = vpop.f32.mrb[0].mxu0
          %v2336 = vadd.f32 0.0, %v2335
          %v2337 = vpop.f32.mrb[0].mxu0
          %v2338 = vadd.f32 0.0, %v2337
          %2339 = vmatprep.mubr.f32.mxu0 0.0
          %2340 = vmatmul.mubr.f32.gmra.mrb[0].mxu0 %v2172
          %v2341 = vpop.f32.mrb[0].mxu0
          %v2342 = vadd.f32 0.0, %v2341
          %v2343 = vpop.f32.mrb[0].mxu0
          %v2344 = vadd.f32 0.0, %v2343
          %2345 = vmatprep.mubr.f32.mxu0 0.0
          %2346 = vmatmul.mubr.f32.gmra.mrb[0].mxu0 %v2175
          %v2347 = vpop.f32.mrb[0].mxu0
          %v2348 = vadd.f32 0.0, %v2347
          %v2349 = vpop.f32.mrb[0].mxu0
          %v2350 = vadd.f32 0.0, %v2349
          %2351 = vmatprep.mubr.f32.mxu0 0.0
          %2352 = vmatmul.mubr.f32.gmra.mrb[0].mxu0 %v2178
          %v2353 = vpop.f32.mrb[0].mxu0
          %v2354 = vadd.f32 0.0, %v2353
          %v2355 = vpop.f32.mrb[0].mxu0
          %v2356 = vadd.f32 0.0, %v2355
          %2357 = vdwg.mxu0
          %v2358 = vmax.f32 %v2247, 0.0
          %v2359 = vmax.f32 %v2249, 0.0
          %v2360 = vmax.f32 %v2336, 0.0
          %v2361 = vmax.f32 %v2338, 0.0
          %v2362 = vmax.f32 %v2253, 0.0
          %v2363 = vmax.f32 %v2255, 0.0
          %v2364 = vmax.f32 %v2342, 0.0
          %v2365 = vmax.f32 %v2344, 0.0
          %v2366 = vmax.f32 %v2259, 0.0
          %v2367 = vmax.f32 %v2261, 0.0
          %v2368 = vmax.f32 %v2348, 0.0
          %v2369 = vmax.f32 %v2350, 0.0
          %v2370 = vmax.f32 %v2265, 0.0
          %v2371 = vmax.f32 %v2267, 0.0
          %v2372 = vmax.f32 %v2354, 0.0
          %v2373 = vmax.f32 %v2356, 0.0
          %2374 = vmatprep.subr.mxu0 %v2359
          %2375 = vmatpush1.msra.mxu0 %v2358
          %2376 = vmatprep.subr.mxu0 %v2363
          %2377 = vmatpush1.msra.mxu0 %v2362
          %2378 = vmatprep.subr.mxu0 %v2367
          %2379 = vmatpush1.msra.mxu0 %v2366
          %2380 = vmatprep.subr.mxu0 %v2371
          %2381 = vmatpush1.msra.mxu0 %v2370
          %2382 = vmatprep.subr.mxu0 0.0
          %2383 = vmatpush1.msra.mxu0 0.0
          %2384 = vmatprep.subr.mxu0 0.0
          %2385 = vmatpush1.msra.mxu0 0.0
          %2386 = vmatprep.subr.mxu0 0.0
          %2387 = vmatpush1.msra.mxu0 0.0
          %2388 = vmatprep.subr.mxu0 0.0
          %2389 = vmatpush1.msra.mxu0 0.0
          %2390 = vmatprep.subr.mxu0 0.0
          %2391 = vmatpush1.msra.mxu0 0.0
          %2392 = vmatprep.subr.mxu0 0.0
          %2393 = vmatpush1.msra.mxu0 0.0
          %2394 = vmatprep.subr.mxu0 0.0
          %2395 = vmatpush1.msra.mxu0 0.0
          %2396 = vmatprep.subr.mxu0 0.0
          %2397 = vmatpush1.msra.mxu0 0.0
          %2398 = vmatprep.subr.mxu0 0.0
          %2399 = vmatpush1.msra.mxu0 0.0
          %2400 = vmatprep.subr.mxu0 0.0
          %2401 = vmatpush1.msra.mxu0 0.0
          %2402 = vmatprep.subr.mxu0 0.0
          %2403 = vmatpush1.msra.mxu0 0.0
          %2404 = vmatprep.subr.mxu0 0.0
          %2405 = vmatpush1.msra.mxu0 0.0
          %2406 = vmatprep.subr.mxu0 0.0
          %2407 = vmatpush1.msra.mxu0 0.0
          %2408 = vmatprep.subr.mxu0 0.0
          %2409 = vmatpush1.msra.mxu0 0.0
          %2410 = vmatprep.subr.mxu0 0.0
          %2411 = vmatpush1.msra.mxu0 0.0
          %2412 = vmatprep.subr.mxu0 0.0
          %2413 = vmatpush1.msra.mxu0 0.0
          %2414 = vmatprep.subr.mxu0 0.0
          %2415 = vmatpush1.msra.mxu0 0.0
          %2416 = vmatprep.subr.mxu0 0.0
          %2417 = vmatpush1.msra.mxu0 0.0
          %2418 = vmatprep.subr.mxu0 0.0
          %2419 = vmatpush1.msra.mxu0 0.0
          %2420 = vmatprep.subr.mxu0 0.0
          %2421 = vmatpush1.msra.mxu0 0.0
          %2422 = vmatprep.subr.mxu0 0.0
          %2423 = vmatpush1.msra.mxu0 0.0
          %2424 = vmatprep.subr.mxu0 0.0
          %2425 = vmatpush1.msra.mxu0 0.0
          %2426 = vmatprep.subr.mxu0 0.0
          %2427 = vmatpush1.msra.mxu0 0.0
          %2428 = vmatprep.subr.mxu0 0.0
          %2429 = vmatpush1.msra.mxu0 0.0
          %2430 = vmatprep.subr.mxu0 0.0
          %2431 = vmatpush1.msra.mxu0 0.0
          %2432 = vmatprep.subr.mxu0 0.0
          %2433 = vmatpush1.msra.mxu0 0.0
          %2434 = vmatprep.subr.mxu0 0.0
          %2435 = vmatpush1.msra.mxu0 0.0
          %2436 = vmatprep.subr.mxu0 0.0
          %2437 = vmatpush1.msra.mxu0 0.0
          %2438 = vmatprep.mubr.f32.mxu0 0.0
          %2439 = vmatmul.mubr.f32.gmra.mrb[0].mxu0 %v574
          %v2440 = vpop.f32.mrb[0].mxu0
          %v2441 = vadd.f32 %v571, %v2440
          %v2442 = vpop.f32.mrb[0].mxu0
          %v2443 = vadd.f32 %v571, %v2442
          %2444 = vdwg.mxu0
          %2445 = vmatprep.subr.mxu0 %v2361
          %2446 = vmatpush1.msra.mxu0 %v2360
          %2447 = vmatprep.subr.mxu0 %v2365
          %2448 = vmatpush1.msra.mxu0 %v2364
          %2449 = vmatprep.subr.mxu0 %v2369
          %2450 = vmatpush1.msra.mxu0 %v2368
          %2451 = vmatprep.subr.mxu0 %v2373
          %2452 = vmatpush1.msra.mxu0 %v2372
          %2453 = vmatprep.subr.mxu0 0.0
          %2454 = vmatpush1.msra.mxu0 0.0
          %2455 = vmatprep.subr.mxu0 0.0
          %2456 = vmatpush1.msra.mxu0 0.0
          %2457 = vmatprep.subr.mxu0 0.0
          %2458 = vmatpush1.msra.mxu0 0.0
          %2459 = vmatprep.subr.mxu0 0.0
          %2460 = vmatpush1.msra.mxu0 0.0
          %2461 = vmatprep.subr.mxu0 0.0
          %2462 = vmatpush1.msra.mxu0 0.0
          %2463 = vmatprep.subr.mxu0 0.0
          %2464 = vmatpush1.msra.mxu0 0.0
          %2465 = vmatprep.subr.mxu0 0.0
          %2466 = vmatpush1.msra.mxu0 0.0
          %2467 = vmatprep.subr.mxu0 0.0
          %2468 = vmatpush1.msra.mxu0 0.0
          %2469 = vmatprep.subr.mxu0 0.0
          %2470 = vmatpush1.msra.mxu0 0.0
          %2471 = vmatprep.subr.mxu0 0.0
          %2472 = vmatpush1.msra.mxu0 0.0
          %2473 = vmatprep.subr.mxu0 0.0
          %2474 = vmatpush1.msra.mxu0 0.0
          %2475 = vmatprep.subr.mxu0 0.0
          %2476 = vmatpush1.msra.mxu0 0.0
          %2477 = vmatprep.subr.mxu0 0.0
          %2478 = vmatpush1.msra.mxu0 0.0
          %2479 = vmatprep.subr.mxu0 0.0
          %2480 = vmatpush1.msra.mxu0 0.0
          %2481 = vmatprep.subr.mxu0 0.0
          %2482 = vmatpush1.msra.mxu0 0.0
          %2483 = vmatprep.subr.mxu0 0.0
          %2484 = vmatpush1.msra.mxu0 0.0
          %2485 = vmatprep.subr.mxu0 0.0
          %2486 = vmatpush1.msra.mxu0 0.0
          %2487 = vmatprep.subr.mxu0 0.0
          %2488 = vmatpush1.msra.mxu0 0.0
          %2489 = vmatprep.subr.mxu0 0.0
          %2490 = vmatpush1.msra.mxu0 0.0
          %2491 = vmatprep.subr.mxu0 0.0
          %2492 = vmatpush1.msra.mxu0 0.0
          %2493 = vmatprep.subr.mxu0 0.0
          %2494 = vmatpush1.msra.mxu0 0.0
          %2495 = vmatprep.subr.mxu0 0.0
          %2496 = vmatpush1.msra.mxu0 0.0
          %2497 = vmatprep.subr.mxu0 0.0
          %2498 = vmatpush1.msra.mxu0 0.0
          %2499 = vmatprep.subr.mxu0 0.0
          %2500 = vmatpush1.msra.mxu0 0.0
          %2501 = vmatprep.subr.mxu0 0.0
          %2502 = vmatpush1.msra.mxu0 0.0
          %2503 = vmatprep.subr.mxu0 0.0
          %2504 = vmatpush1.msra.mxu0 0.0
          %2505 = vmatprep.subr.mxu0 0.0
          %2506 = vmatpush1.msra.mxu0 0.0
          %2507 = vmatprep.subr.mxu0 0.0
          %2508 = vmatpush1.msra.mxu0 0.0
          %2509 = vmatprep.mubr.f32.mxu0 0.0
          %2510 = vmatmul.mubr.f32.gmra.mrb[0].mxu0 %v574
          %v2511 = vpop.f32.mrb[0].mxu0
          %v2512 = vadd.f32 %v571, %v2511
          %v2513 = vpop.f32.mrb[0].mxu0
          %v2514 = vadd.f32 %v571, %v2513
          %2515 = vdwg.mxu0
          %v2520 = vrot.slane %v1094, 7
          %v2521 = vrot.slane %v1096, 7
          %v2522 = vrot.slane %v1165, 7
          %v2523 = vrot.slane %v1167, 7
          %v2532 = vrot.slane %v1543, 6
          %v2533 = vrot.slane %v1545, 6
          %v2534 = vrot.slane %v1614, 6
          %v2535 = vrot.slane %v1616, 6
          %v2544 = vrot.slane %v1992, 5
          %v2545 = vrot.slane %v1994, 5
          %v2546 = vrot.slane %v2063, 5
          %v2547 = vrot.slane %v2065, 5
          %v2556 = vrot.slane %v2441, 4
          %v2557 = vrot.slane %v2443, 4
          %v2558 = vrot.slane %v2512, 4
          %v2559 = vrot.slane %v2514, 4
          %vm2564 = vcmask 1040384
          %v2565 = vsel %vm2564, %v643, %v2520
          %v2566 = vsel %vm2564, %v645, %v2521
          %v2567 = vsel %vm2564, %v714, %v2522
          %v2568 = vsel %vm2564, %v716, %v2523
          %vm2569 = vcmask 1041408
          %v2570 = vsel %vm2569, %v2565, %v2532
          %v2571 = vsel %vm2569, %v2566, %v2533
          %v2572 = vsel %vm2569, %v2567, %v2534
          %v2573 = vsel %vm2569, %v2568, %v2535
          %vm2574 = vcmask 1042432
          %v2575 = vsel %vm2574, %v2570, %v2544
          %v2576 = vsel %vm2574, %v2571, %v2545
          %v2577 = vsel %vm2574, %v2572, %v2546
          %v2578 = vsel %vm2574, %v2573, %v2547
          %vm2579 = vcmask 1043456
          %v2580 = vsel %vm2579, %v2575, %v2556
          %v2581 = vsel %vm2579, %v2576, %v2557
          %v2582 = vsel %vm2579, %v2577, %v2558
          %v2583 = vsel %vm2579, %v2578, %v2559
          %s2584 = smul.addr %s316, 8
          %s2585 = scalar_lea.vmem %s277, %s2584 [#allocation4]
          %2586 = vst [vmem:[%s2585] sm:$0x1f] %v2580
          %2587 = vst [vmem:[%s2585 + $0x8] sm:$0x1f] %v2581
          %2588 = vst [vmem:[%s2585 + $0x10] sm:$0x1f] %v2582
          %2589 = vst [vmem:[%s2585 + $0x18] sm:$0x1f] %v2583
        $region49: #{tpu_custom_call.1} parent=43 // loop_footer
          %s314 = sadd.s32 1, %s310
        $region50: #{tpu_custom_call.1} parent=43 // loop_footer_branch
          %309 = sbr.rel target = $region46
        $region51: #{tpu_custom_call.1} parent=43 // loop_exit
          _
        %s2590 = sand.u32 %s171, 1
        %s2591 = scalar_lea.sflag [#allocation5], %s2590
        %s2592 = sand.u32 %s171, 1
        %s2593 = smul.addr %s2592, 128
        %s2594 = scalar_lea.vmem [#allocation4], %s2593
        // Predicated region
        $region52: #{tpu_custom_call.1} parent=43 // pred_check
          %p2595 = pneg %p181
        $region53: #{tpu_custom_call.1} parent=43 // pred_check_branch
          %2597 = sbr.rel (%p2595) target = $region55
        $region54: #{tpu_custom_call.1} parent=43 // pred_region
          %s2598 = smul.u32 16, %s22
          %s2600 = ssub.s32 2048, 2048
          %2601 = vsyncadd %s2591, %s2600
          %s2602 = smul.addr %s2598, 128
          %s2603 = scalar_lea.hbm %s6, %s2602
          %s2605 = sshll.u32 %s2594, 4
          %s2606 = int_to_ptr.vmem [resolvable:$true] %s2605
          %2608 = dma.vmem_to_hbm [thread:$0]  %s2606, 2048, %s2603, %s2591
        $region55: #{tpu_custom_call.1} parent=43 // pred_fallthru
          _
      $region44: #{tpu_custom_call.1} parent=5 // pred_fallthru
        _
      %p2609 = scmp.le.s32.totalorder 2, %s17
      // Predicated region
      $region56: #{tpu_custom_call.1} parent=5 // pred_check
        %p2610 = pneg %p2609
      $region57: #{tpu_custom_call.1} parent=5 // pred_check_branch
        %2612 = sbr.rel (%p2610) target = $region59
      $region58: #{tpu_custom_call.1} parent=5 // pred_region
        %s2613 = ssub.s32 %s17, 2
        // Predicated region
        $region60: #{tpu_custom_call.1} parent=58 // pred_check
          %p2614 = pneg %p187
        $region61: #{tpu_custom_call.1} parent=58 // pred_check_branch
          %2616 = sbr.rel (%p2614) target = $region63
        $region62: #{tpu_custom_call.1} parent=58 // pred_region
          %s2617 = sand.u32 %s172, 1
          %s2618 = scalar_lea.sflag [#allocation5], %s2617
          %s2619 = sand.u32 %s172, 1
          %s2620 = smul.addr %s2619, 128
          %s2621 = scalar_lea.vmem [#allocation4], %s2620
          %2622 = dma.done %s2618, 2048
        $region63: #{tpu_custom_call.1} parent=58 // pred_fallthru
          _
      $region59: #{tpu_custom_call.1} parent=5 // pred_fallthru
        _
    $region6: #{tpu_custom_call.1} parent=1 // loop_footer
      %s21 = sadd.s32 1, %s17
    $region7: #{tpu_custom_call.1} parent=1 // loop_footer_branch
      %16 = sbr.rel target = $region3
    $region8: #{tpu_custom_call.1} parent=1 // loop_exit
      _
    %2623 = vsyncpa [#allocation5], 1
    %s2624 = scalar_lea.sflag [#allocation5], 1
    %2625 = vsyncpa %s2624, 1

</llo_original>
